<compile_context>
chip_gen: v5e
topology: v5e:2x2
jax: 0.10.0
libtpu: 0.0.40
codegen_flags: <defaults>
</compile_context>

<pallas_src>
import numpy as np
import jax
import jax.numpy as jnp
from jax import lax
from jax.experimental import pallas as pl
from jax.experimental.pallas import tpu as pltpu


# ----------------------------------------------------------------------------
# positional encoding (same math as the reference, host-side numpy)
# ----------------------------------------------------------------------------
def positional_encoding(seq_len, d_model):
    position = np.arange(seq_len).reshape(-1, 1)
    div_term = np.exp(np.arange(0, d_model, 2) * -(np.log(10000.0) / d_model))
    pe = np.zeros((seq_len, d_model))
    pe[:, 0::2] = np.sin(position * div_term)
    pe[:, 1::2] = np.cos(position * div_term)
    return jnp.asarray(pe, dtype=jnp.float32)


# ----------------------------------------------------------------------------
# fused kernel: in_proj -> conv+SiLU -> n_layer SSD scans -> D skip -> out_proj
# ----------------------------------------------------------------------------
def _make_fused_kernel(L, dm, d_inner, N, H, P, K, cl, n_layer, conv_dim):
    C = L // cl
    f32 = jnp.float32

    def kernel(u_ref, pos_ref, wxbc_ref, wdt_ref, convw_ref, convb_ref,
               dtb_ref, alog_ref, drep_ref, wout_ref,
               y_ref, cst_ref, fs_ref, xp_ref):
        # ------------------- in_proj (+ positional encoding) ----------------
        xin = u_ref[0] + pos_ref[...]                                # (L, dm)
        xbc_raw = jnp.dot(xin, wxbc_ref[...],
                          preferred_element_type=f32)                # (L, conv_dim)
        dt_raw = jnp.dot(xin, wdt_ref[...],
                         preferred_element_type=f32)                 # (L, H)

        # ---------- conv_state cache + depthwise causal conv + SiLU ---------
        xp_ref[...] = jnp.concatenate(
            [jnp.zeros((K - 1, conv_dim), f32), xbc_raw], axis=0)    # left pad
        cst_ref[0] = xp_ref[L - 1:L + K - 1, :]          # last K pre-conv rows

        acc = jnp.zeros((L, conv_dim), f32)
        for k in range(K):
            acc = acc + xp_ref[k:k + L, :] * convw_ref[k:k + 1, :]
        acc = acc + convb_ref[...]
        xbc = acc * (1.0 / (1.0 + jnp.exp(-acc)))                    # SiLU

        x_all = xbc[:, :d_inner]                                     # (L, H*P)
        Bm = xbc[:, d_inner:d_inner + N]                             # (L, N)
        Cm = xbc[:, d_inner + N:]                                    # (L, N)

        # --------------------- dt softplus, A = -exp(A_log) -----------------
        zdt = dt_raw + dtb_ref[...]
        dtv = jnp.where(zdt > 20.0, zdt, jnp.log(1.0 + jnp.exp(zdt)))  # (L, H)
        a_all = dtv * (-jnp.exp(alog_ref[...]))                        # (L, H)

        # ------------- chunk triangular masks (in-kernel iota) --------------
        ri = lax.broadcasted_iota(jnp.int32, (cl, cl), 0)
        ci = lax.broadcasted_iota(jnp.int32, (cl, cl), 1)
        ltf = (ri >= ci).astype(f32)     # inclusive lower triangular (cumsum)
        slf = (ri > ci).astype(f32)      # strictly lower triangular
        trib = ri >= ci

        def layer_body(_, carry):
            hidden, _prev = carry
            state = jnp.zeros((H * P, N), f32)
            out_rows = []
            for c in range(C):
                r0 = c * cl
                a_c = a_all[r0:r0 + cl, :]                # (cl, H)
                dt_c = dtv[r0:r0 + cl, :]                 # (cl, H)
                Bc = Bm[r0:r0 + cl, :]                    # (cl, N)
                Cc = Cm[r0:r0 + cl, :]                    # (cl, N)
                h_c = hidden[r0:r0 + cl, :]               # (cl, H*P)

                # segsum quantities batched over heads (two MXU pushes total)
                cs_all = jnp.dot(ltf, a_c, preferred_element_type=f32)  # (cl,H)
                stacked = jnp.concatenate(
                    [a_c[:, h:h + 1] * slf for h in range(H)], axis=1)
                S_all = jnp.dot(ltf, stacked,
                                preferred_element_type=f32)             # (cl,H*cl)
                # head-shared C @ B^T (hoisted out of the head loop)
                CB = lax.dot_general(Cc, Bc, (((1,), (1,)), ((), ())),
                                     preferred_element_type=f32)        # (cl,cl)

                y_cols, st_rows = [], []
                for h in range(H):
                    cs_h = cs_all[:, h:h + 1]                           # (cl,1)
                    tot_h = cs_all[cl - 1:cl, h:h + 1]                  # (1,1)
                    Lmat = jnp.where(
                        trib, jnp.exp(S_all[:, h * cl:(h + 1) * cl]), 0.0)
                    xin_h = h_c[:, h * P:(h + 1) * P] * dt_c[:, h:h + 1]
                    st_h = state[h * P:(h + 1) * P, :]                  # (P,N)

                    y_diag = jnp.dot(CB * Lmat, xin_h,
                                     preferred_element_type=f32)        # (cl,P)
                    y_off = lax.dot_general(
                        Cc, st_h, (((1,), (1,)), ((), ())),
                        preferred_element_type=f32)                     # (cl,P)
                    y_cols.append(y_diag + y_off * jnp.exp(cs_h))

                    xs = xin_h * jnp.exp(tot_h - cs_h)
                    cstate = lax.dot_general(
                        xs, Bc, (((0,), (0,)), ((), ())),
                        preferred_element_type=f32)                     # (P,N)
                    st_rows.append(jnp.exp(tot_h) * st_h + cstate)

                state = jnp.concatenate(st_rows, axis=0)          # (H*P, N)
                out_rows.append(jnp.concatenate(y_cols, axis=1))  # (cl, H*P)
            new_hidden = jnp.concatenate(out_rows, axis=0)        # (L, H*P)
            return (new_hidden, state)

        hidden_f, state_f = lax.fori_loop(
            0, n_layer, layer_body, (x_all, jnp.zeros((H * P, N), f32)))

        # ----------- D skip + out_proj (ContraNorm(0) is identity) ----------
        y_full = hidden_f + x_all * drep_ref[...]                 # (L, H*P)
        y_ref[0] = jnp.dot(y_full, wout_ref[...],
                           preferred_element_type=f32)            # (L, dm)
        fs_ref[0] = state_f                                       # (H*P, N)

    return kernel


# ----------------------------------------------------------------------------
# wrapper
# ----------------------------------------------------------------------------
def mamba2_forward(u, params, cfg):
    d_inner, d_state = cfg["d_inner"], cfg["d_state"]
    H, K = cfg["nheads"], cfg["d_conv"]
    cl, n_layer = cfg["chunk_size"], cfg["n_layer"]
    B, L, dm = u.shape
    P = d_inner // H
    conv_dim = d_inner + 2 * d_state
    assert L % cl == 0 and L >= K

    pos = params["pos_enc"][:L, :]
    kernel = _make_fused_kernel(L, dm, d_inner, d_state, H, P, K, cl,
                                n_layer, conv_dim)

    y, conv_state_t, ssm_flat = pl.pallas_call(
        kernel,
        out_shape=(
            jax.ShapeDtypeStruct((B, L, dm), jnp.float32),
            jax.ShapeDtypeStruct((B, K, conv_dim), jnp.float32),
            jax.ShapeDtypeStruct((B, H * P, d_state), jnp.float32),
        ),
        grid=(B,),
        in_specs=[
            pl.BlockSpec((1, L, dm), lambda b: (b, 0, 0)),          # u
            pl.BlockSpec((L, dm), lambda b: (0, 0)),                # pos enc
            pl.BlockSpec((dm, conv_dim), lambda b: (0, 0)),         # W_in (xBC cols)
            pl.BlockSpec((dm, H), lambda b: (0, 0)),                # W_in (dt cols)
            pl.BlockSpec((K, conv_dim), lambda b: (0, 0)),          # conv weight
            pl.BlockSpec((1, conv_dim), lambda b: (0, 0)),          # conv bias
            pl.BlockSpec((1, H), lambda b: (0, 0)),                 # dt_bias
            pl.BlockSpec((1, H), lambda b: (0, 0)),                 # A_log
            pl.BlockSpec((1, d_inner), lambda b: (0, 0)),           # D (repeated)
            pl.BlockSpec((d_inner, dm), lambda b: (0, 0)),          # W_out^T
        ],
        out_specs=(
            pl.BlockSpec((1, L, dm), lambda b: (b, 0, 0)),
            pl.BlockSpec((1, K, conv_dim), lambda b: (b, 0, 0)),
            pl.BlockSpec((1, H * P, d_state), lambda b: (b, 0, 0)),
        ),
        scratch_shapes=[pltpu.VMEM((L + K - 1, conv_dim), jnp.float32)],
        compiler_params=pltpu.CompilerParams(
            dimension_semantics=("parallel",)),
    )(u, pos, params["w_xbc_t"], params["w_dt_t"], params["conv_w_k"],
      params["conv_b"], params["dt_bias"], params["A_log"], params["d_rep"],
      params["w_out_t"])

    conv_state = jnp.swapaxes(conv_state_t, 1, 2)       # (B, conv_dim, d_conv)
    ssm_state = ssm_flat.reshape(B, H, P, d_state)      # (B, H, P, N)
    return y, (conv_state, ssm_state)


# ----------------------------------------------------------------------------
if __name__ == "__main__":
    # small Mamba2 config
    d_model, n_layer = 32, 2
    d_state, d_conv, expand, headdim, chunk_size = 16, 4, 2, 16, 8
    d_inner = expand * d_model            # 64
    nheads = d_inner // headdim           # 4
    d_in_proj = 2 * d_inner + 2 * d_state + nheads   # 164
    conv_dim = d_inner + 2 * d_state      # 96
    batch, seqlen = 2, 16

    cfg = dict(d_inner=d_inner, d_state=d_state, nheads=nheads,
               d_conv=d_conv, chunk_size=chunk_size, n_layer=n_layer)

    key = jax.random.PRNGKey(0)
    ks = jax.random.split(key, 8)

    # Full in_proj weight (as in the torch module), then keep only the columns
    # the forward pass actually uses (xBC and dt; z is never used by forward).
    w_in = 0.1 * jax.random.normal(ks[0], (d_in_proj, d_model))
    w_xbc_t = jnp.transpose(w_in[d_inner:d_inner + conv_dim, :])   # (dm, conv_dim)
    w_dt_t = jnp.transpose(w_in[d_inner + conv_dim:, :])           # (dm, H)

    d_vec = 0.1 * jax.random.normal(ks[5], (nheads,))

    params = {
        "pos_enc": positional_encoding(d_model, d_model),
        "w_xbc_t": w_xbc_t,
        "w_dt_t": w_dt_t,
        "conv_w_k": jnp.transpose(
            0.1 * jax.random.normal(ks[1], (conv_dim, d_conv))),   # (K, conv_dim)
        "conv_b": (0.1 * jax.random.normal(ks[2], (conv_dim,))
                   ).reshape(1, conv_dim),
        "dt_bias": (0.1 * jax.random.normal(ks[3], (nheads,))
                    ).reshape(1, nheads),
        "A_log": (0.1 * jax.random.normal(ks[4], (nheads,))
                  ).reshape(1, nheads),
        "d_rep": jnp.repeat(d_vec, headdim).reshape(1, d_inner),   # D per channel
        "w_out_t": jnp.transpose(
            0.1 * jax.random.normal(ks[6], (d_model, d_inner))),   # (d_inner, dm)
    }
    params = jax.tree_util.tree_map(lambda a: a.astype(jnp.float32), params)

    u = jax.random.normal(ks[7], (batch, seqlen, d_model), dtype=jnp.float32)

    fwd = jax.jit(lambda u_, p_: mamba2_forward(u_, p_, cfg))
    y, (conv_state, ssm_state) = fwd(u, params)
    jax.block_until_ready((y, conv_state, ssm_state))

    assert y.shape == (batch, seqlen, d_model)
    assert conv_state.shape == (batch, conv_dim, d_conv)
    assert ssm_state.shape == (batch, nheads, headdim, d_state)
    print("KERNEL_OK")
</pallas_src>

<mosaic_0001>
module attributes {stable_mosaic.version = 11 : i64} {
  func.func @kernel(%arg0: i32, %arg1: memref<1x16x32xf32, #tpu.memory_space<vmem>>, %arg2: memref<16x32xf32, #tpu.memory_space<vmem>>, %arg3: memref<32x96xf32, #tpu.memory_space<vmem>>, %arg4: memref<32x4xf32, #tpu.memory_space<vmem>>, %arg5: memref<4x96xf32, #tpu.memory_space<vmem>>, %arg6: memref<1x96xf32, #tpu.memory_space<vmem>>, %arg7: memref<1x4xf32, #tpu.memory_space<vmem>>, %arg8: memref<1x4xf32, #tpu.memory_space<vmem>>, %arg9: memref<1x64xf32, #tpu.memory_space<vmem>>, %arg10: memref<64x32xf32, #tpu.memory_space<vmem>>, %arg11: memref<1x16x32xf32, #tpu.memory_space<vmem>>, %arg12: memref<1x4x96xf32, #tpu.memory_space<vmem>>, %arg13: memref<1x64x16xf32, #tpu.memory_space<vmem>>, %arg14: memref<19x96xf32, #tpu.memory_space<vmem>>) attributes {dimension_semantics = [#tpu.dimension_semantics<parallel>], iteration_bounds = array<i64: 2>, scalar_prefetch = 0 : i64, scratch_operands = 1 : i64, tpu.core_type = #tpu.core_type<tc>, window_params = [{transform_indices = @transform_0, window_bounds = array<i64: 1, 16, 32>}, {pipeline_mode = #tpu.pipeline_mode<synchronous>, transform_indices = @transform_1, window_bounds = array<i64: 16, 32>}, {pipeline_mode = #tpu.pipeline_mode<synchronous>, transform_indices = @transform_2, window_bounds = array<i64: 32, 96>}, {pipeline_mode = #tpu.pipeline_mode<synchronous>, transform_indices = @transform_3, window_bounds = array<i64: 32, 4>}, {pipeline_mode = #tpu.pipeline_mode<synchronous>, transform_indices = @transform_4, window_bounds = array<i64: 4, 96>}, {pipeline_mode = #tpu.pipeline_mode<synchronous>, transform_indices = @transform_5, window_bounds = array<i64: 1, 96>}, {pipeline_mode = #tpu.pipeline_mode<synchronous>, transform_indices = @transform_6, window_bounds = array<i64: 1, 4>}, {pipeline_mode = #tpu.pipeline_mode<synchronous>, transform_indices = @transform_7, window_bounds = array<i64: 1, 4>}, {pipeline_mode = #tpu.pipeline_mode<synchronous>, transform_indices = @transform_8, window_bounds = array<i64: 1, 64>}, {pipeline_mode = #tpu.pipeline_mode<synchronous>, transform_indices = @transform_9, window_bounds = array<i64: 64, 32>}, {transform_indices = @transform_10, window_bounds = array<i64: 1, 16, 32>}, {transform_indices = @transform_11, window_bounds = array<i64: 1, 4, 96>}, {transform_indices = @transform_12, window_bounds = array<i64: 1, 64, 16>}]} {
    %c0 = arith.constant 0 : index
    %c0_0 = arith.constant 0 : index
    %c0_1 = arith.constant 0 : index
    %0 = vector.load %arg1[%c0, %c0_0, %c0_1] : memref<1x16x32xf32, #tpu.memory_space<vmem>>, vector<1x16x32xf32>
    %1 = vector.shape_cast %0 : vector<1x16x32xf32> to vector<16x32xf32>
    %c0_2 = arith.constant 0 : index
    %c0_3 = arith.constant 0 : index
    %2 = vector.load %arg2[%c0_2, %c0_3] : memref<16x32xf32, #tpu.memory_space<vmem>>, vector<16x32xf32>
    %3 = arith.addf %1, %2 : vector<16x32xf32>
    %c0_4 = arith.constant 0 : index
    %c0_5 = arith.constant 0 : index
    %4 = vector.load %arg3[%c0_4, %c0_5] : memref<32x96xf32, #tpu.memory_space<vmem>>, vector<32x96xf32>
    %cst = arith.constant dense<0.000000e+00> : vector<16x96xf32>
    %5 = tpu.matmul %3, %4, %cst {dimension_numbers = #tpu.dot_dimension_numbers<[1], [0], [0], [1], [0, 0, 1, 1], [], []>} : vector<16x32xf32>, vector<32x96xf32>, vector<16x96xf32> -> vector<16x96xf32>
    %c0_6 = arith.constant 0 : index
    %c0_7 = arith.constant 0 : index
    %6 = vector.load %arg4[%c0_6, %c0_7] : memref<32x4xf32, #tpu.memory_space<vmem>>, vector<32x4xf32>
    %cst_8 = arith.constant dense<0.000000e+00> : vector<16x4xf32>
    %7 = tpu.matmul %3, %6, %cst_8 {dimension_numbers = #tpu.dot_dimension_numbers<[1], [0], [0], [1], [0, 0, 1, 1], [], []>} : vector<16x32xf32>, vector<32x4xf32>, vector<16x4xf32> -> vector<16x4xf32>
    %cst_9 = arith.constant 0.000000e+00 : f32
    %8 = vector.broadcast %cst_9 : f32 to vector<3x96xf32>
    %9 = tpu.concatenate %8, %5 in 0 : vector<3x96xf32>, vector<16x96xf32> -> vector<19x96xf32>
    %c0_10 = arith.constant 0 : index
    %c0_11 = arith.constant 0 : index
    %10 = vector.load %arg14[%c0_10, %c0_11] : memref<19x96xf32, #tpu.memory_space<vmem>>, vector<19x96xf32>
    tpu.vector_store %arg14[%c0_10, %c0_11], %9 {strides = array<i32>} : memref<19x96xf32, #tpu.memory_space<vmem>>, vector<19x96xf32>,
    %c15 = arith.constant 15 : index
    %c0_12 = arith.constant 0 : index
    %11 = vector.load %arg14[%c15, %c0_12] : memref<19x96xf32, #tpu.memory_space<vmem>>, vector<4x96xf32>
    %c0_13 = arith.constant 0 : index
    %c0_14 = arith.constant 0 : index
    %c0_15 = arith.constant 0 : index
    %12 = vector.load %arg12[%c0_13, %c0_14, %c0_15] : memref<1x4x96xf32, #tpu.memory_space<vmem>>, vector<1x4x96xf32>
    %13 = vector.shape_cast %12 : vector<1x4x96xf32> to vector<4x96xf32>
    %14 = vector.shape_cast %11 : vector<4x96xf32> to vector<1x4x96xf32>
    tpu.vector_store %arg12[%c0_13, %c0_14, %c0_15], %14 {strides = array<i32>} : memref<1x4x96xf32, #tpu.memory_space<vmem>>, vector<1x4x96xf32>,
    %cst_16 = arith.constant 0.000000e+00 : f32
    %15 = vector.broadcast %cst_16 : f32 to vector<16x96xf32>
    %c0_17 = arith.constant 0 : index
    %c0_18 = arith.constant 0 : index
    %16 = vector.load %arg14[%c0_17, %c0_18] : memref<19x96xf32, #tpu.memory_space<vmem>>, vector<16x96xf32>
    %c0_19 = arith.constant 0 : index
    %c0_20 = arith.constant 0 : index
    %17 = vector.load %arg5[%c0_19, %c0_20] : memref<4x96xf32, #tpu.memory_space<vmem>>, vector<1x96xf32>
    %18 = vector.broadcast %17 : vector<1x96xf32> to vector<16x96xf32>
    %19 = arith.mulf %16, %18 : vector<16x96xf32>
    %20 = arith.addf %15, %19 : vector<16x96xf32>
    %c1 = arith.constant 1 : index
    %c0_21 = arith.constant 0 : index
    %21 = vector.load %arg14[%c1, %c0_21] : memref<19x96xf32, #tpu.memory_space<vmem>>, vector<16x96xf32>
    %c1_22 = arith.constant 1 : index
    %c0_23 = arith.constant 0 : index
    %22 = vector.load %arg5[%c1_22, %c0_23] : memref<4x96xf32, #tpu.memory_space<vmem>>, vector<1x96xf32>
    %23 = vector.broadcast %22 : vector<1x96xf32> to vector<16x96xf32>
    %24 = arith.mulf %21, %23 : vector<16x96xf32>
    %25 = arith.addf %20, %24 : vector<16x96xf32>
    %c2 = arith.constant 2 : index
    %c0_24 = arith.constant 0 : index
    %26 = vector.load %arg14[%c2, %c0_24] : memref<19x96xf32, #tpu.memory_space<vmem>>, vector<16x96xf32>
    %c2_25 = arith.constant 2 : index
    %c0_26 = arith.constant 0 : index
    %27 = vector.load %arg5[%c2_25, %c0_26] : memref<4x96xf32, #tpu.memory_space<vmem>>, vector<1x96xf32>
    %28 = vector.broadcast %27 : vector<1x96xf32> to vector<16x96xf32>
    %29 = arith.mulf %26, %28 : vector<16x96xf32>
    %30 = arith.addf %25, %29 : vector<16x96xf32>
    %c3 = arith.constant 3 : index
    %c0_27 = arith.constant 0 : index
    %31 = vector.load %arg14[%c3, %c0_27] : memref<19x96xf32, #tpu.memory_space<vmem>>, vector<16x96xf32>
    %c3_28 = arith.constant 3 : index
    %c0_29 = arith.constant 0 : index
    %32 = vector.load %arg5[%c3_28, %c0_29] : memref<4x96xf32, #tpu.memory_space<vmem>>, vector<1x96xf32>
    %33 = vector.broadcast %32 : vector<1x96xf32> to vector<16x96xf32>
    %34 = arith.mulf %31, %33 : vector<16x96xf32>
    %35 = arith.addf %30, %34 : vector<16x96xf32>
    %c0_30 = arith.constant 0 : index
    %c0_31 = arith.constant 0 : index
    %36 = vector.load %arg6[%c0_30, %c0_31] : memref<1x96xf32, #tpu.memory_space<vmem>>, vector<1x96xf32>
    %37 = vector.broadcast %36 : vector<1x96xf32> to vector<16x96xf32>
    %38 = arith.addf %35, %37 : vector<16x96xf32>
    %cst_32 = arith.constant 0.000000e+00 : f32
    %39 = vector.broadcast %cst_32 : f32 to vector<16x96xf32>
    %40 = arith.subf %39, %38 : vector<16x96xf32>
    %41 = math.exp %40 : vector<16x96xf32>
    %cst_33 = arith.constant 1.000000e+00 : f32
    %42 = vector.broadcast %cst_33 : f32 to vector<16x96xf32>
    %43 = arith.addf %42, %41 : vector<16x96xf32>
    %cst_34 = arith.constant 1.000000e+00 : f32
    %44 = vector.broadcast %cst_34 : f32 to vector<16x96xf32>
    %45 = arith.divf %44, %43 : vector<16x96xf32>
    %46 = arith.mulf %38, %45 : vector<16x96xf32>
    %47 = vector.extract_strided_slice %46 {offsets = [0, 0], sizes = [16, 64], strides = [1, 1]} : vector<16x96xf32> to vector<16x64xf32>
    %48 = vector.extract_strided_slice %46 {offsets = [0, 64], sizes = [16, 16], strides = [1, 1]} : vector<16x96xf32> to vector<16x16xf32>
    %49 = vector.extract_strided_slice %46 {offsets = [0, 80], sizes = [16, 16], strides = [1, 1]} : vector<16x96xf32> to vector<16x16xf32>
    %c0_35 = arith.constant 0 : index
    %c0_36 = arith.constant 0 : index
    %50 = vector.load %arg7[%c0_35, %c0_36] : memref<1x4xf32, #tpu.memory_space<vmem>>, vector<1x4xf32>
    %51 = vector.broadcast %50 : vector<1x4xf32> to vector<16x4xf32>
    %52 = arith.addf %7, %51 : vector<16x4xf32>
    %cst_37 = arith.constant 2.000000e+01 : f32
    %53 = vector.broadcast %cst_37 : f32 to vector<16x4xf32>
    %54 = arith.cmpf ogt, %52, %53 : vector<16x4xf32>
    %55 = math.exp %52 : vector<16x4xf32>
    %cst_38 = arith.constant 1.000000e+00 : f32
    %56 = vector.broadcast %cst_38 : f32 to vector<16x4xf32>
    %57 = arith.addf %56, %55 : vector<16x4xf32>
    %58 = math.log %57 : vector<16x4xf32>
    %59 = arith.select %54, %52, %58 : vector<16x4xi1>, vector<16x4xf32>
    %c0_39 = arith.constant 0 : index
    %c0_40 = arith.constant 0 : index
    %60 = vector.load %arg8[%c0_39, %c0_40] : memref<1x4xf32, #tpu.memory_space<vmem>>, vector<1x4xf32>
    %61 = math.exp %60 : vector<1x4xf32>
    %cst_41 = arith.constant 0.000000e+00 : f32
    %62 = vector.broadcast %cst_41 : f32 to vector<1x4xf32>
    %63 = arith.subf %62, %61 : vector<1x4xf32>
    %64 = vector.broadcast %63 : vector<1x4xf32> to vector<16x4xf32>
    %65 = arith.mulf %59, %64 : vector<16x4xf32>
    %66 = tpu.iota {dimensions = array<i32: 0>} : vector<8x8xi32>
    %67 = tpu.iota {dimensions = array<i32: 1>} : vector<8x8xi32>
    %68 = arith.cmpi sge, %66, %67 : vector<8x8xi32>
    %69 = arith.extui %68 : vector<8x8xi1> to vector<8x8xi32>
    %70 = arith.sitofp %69 : vector<8x8xi32> to vector<8x8xf32>
    %71 = arith.cmpi sgt, %66, %67 : vector<8x8xi32>
    %72 = arith.extui %71 : vector<8x8xi1> to vector<8x8xi32>
    %73 = arith.sitofp %72 : vector<8x8xi32> to vector<8x8xf32>
    %74 = arith.cmpi sge, %66, %67 : vector<8x8xi32>
    %cst_42 = arith.constant 0.000000e+00 : f32
    %75 = vector.broadcast %cst_42 : f32 to vector<64x16xf32>
    %c0_i32 = arith.constant 0 : i32
    %c2_i32 = arith.constant 2 : i32
    %76 = arith.addi %c0_i32, %c2_i32 : i32
    %c1_i32 = arith.constant 1 : i32
    %77:2 = scf.for %arg15 = %c0_i32 to %76 step %c1_i32 iter_args(%arg16 = %47, %arg17 = %75) -> (vector<16x64xf32>, vector<64x16xf32>)  : i32 {
      %cst_54 = arith.constant 0.000000e+00 : f32
      %90 = vector.broadcast %cst_54 : f32 to vector<64x16xf32>
      %91 = vector.extract_strided_slice %65 {offsets = [0, 0], sizes = [8, 4], strides = [1, 1]} : vector<16x4xf32> to vector<8x4xf32>
      %92 = vector.extract_strided_slice %59 {offsets = [0, 0], sizes = [8, 4], strides = [1, 1]} : vector<16x4xf32> to vector<8x4xf32>
      %93 = vector.extract_strided_slice %48 {offsets = [0, 0], sizes = [8, 16], strides = [1, 1]} : vector<16x16xf32> to vector<8x16xf32>
      %94 = vector.extract_strided_slice %49 {offsets = [0, 0], sizes = [8, 16], strides = [1, 1]} : vector<16x16xf32> to vector<8x16xf32>
      %95 = vector.extract_strided_slice %arg16 {offsets = [0, 0], sizes = [8, 64], strides = [1, 1]} : vector<16x64xf32> to vector<8x64xf32>
      %cst_55 = arith.constant dense<0.000000e+00> : vector<8x4xf32>
      %96 = tpu.matmul %70, %91, %cst_55 {dimension_numbers = #tpu.dot_dimension_numbers<[1], [0], [0], [1], [0, 0, 1, 1], [], []>} : vector<8x8xf32>, vector<8x4xf32>, vector<8x4xf32> -> vector<8x4xf32>
      %97 = vector.extract_strided_slice %91 {offsets = [0, 0], sizes = [8, 1], strides = [1, 1]} : vector<8x4xf32> to vector<8x1xf32>
      %98 = vector.broadcast %97 : vector<8x1xf32> to vector<8x8xf32>
      %99 = arith.mulf %98, %73 : vector<8x8xf32>
      %100 = vector.extract_strided_slice %91 {offsets = [0, 1], sizes = [8, 1], strides = [1, 1]} : vector<8x4xf32> to vector<8x1xf32>
      %101 = vector.broadcast %100 : vector<8x1xf32> to vector<8x8xf32>
      %102 = arith.mulf %101, %73 : vector<8x8xf32>
      %103 = vector.extract_strided_slice %91 {offsets = [0, 2], sizes = [8, 1], strides = [1, 1]} : vector<8x4xf32> to vector<8x1xf32>
      %104 = vector.broadcast %103 : vector<8x1xf32> to vector<8x8xf32>
      %105 = arith.mulf %104, %73 : vector<8x8xf32>
      %106 = vector.extract_strided_slice %91 {offsets = [0, 3], sizes = [8, 1], strides = [1, 1]} : vector<8x4xf32> to vector<8x1xf32>
      %107 = vector.broadcast %106 : vector<8x1xf32> to vector<8x8xf32>
      %108 = arith.mulf %107, %73 : vector<8x8xf32>
      %109 = tpu.concatenate %99, %102, %105, %108 in 1 : vector<8x8xf32>, vector<8x8xf32>, vector<8x8xf32>, vector<8x8xf32> -> vector<8x32xf32>
      %cst_56 = arith.constant dense<0.000000e+00> : vector<8x32xf32>
      %110 = tpu.matmul %70, %109, %cst_56 {dimension_numbers = #tpu.dot_dimension_numbers<[1], [0], [0], [1], [0, 0, 1, 1], [], []>} : vector<8x8xf32>, vector<8x32xf32>, vector<8x32xf32> -> vector<8x32xf32>
      %cst_57 = arith.constant dense<0.000000e+00> : vector<8x8xf32>
      %111 = tpu.matmul %94, %93, %cst_57 {dimension_numbers = #tpu.dot_dimension_numbers<[1], [1], [0], [0], [0, 0, 1, 0], [], []>} : vector<8x16xf32>, vector<8x16xf32>, vector<8x8xf32> -> vector<8x8xf32>
      %112 = vector.extract_strided_slice %96 {offsets = [0, 0], sizes = [8, 1], strides = [1, 1]} : vector<8x4xf32> to vector<8x1xf32>
      %113 = vector.extract_strided_slice %96 {offsets = [7, 0], sizes = [1, 1], strides = [1, 1]} : vector<8x4xf32> to vector<1x1xf32>
      %114 = vector.extract_strided_slice %110 {offsets = [0, 0], sizes = [8, 8], strides = [1, 1]} : vector<8x32xf32> to vector<8x8xf32>
      %115 = math.exp %114 : vector<8x8xf32>
      %cst_58 = arith.constant 0.000000e+00 : f32
      %116 = vector.broadcast %cst_58 : f32 to vector<8x8xf32>
      %117 = arith.select %74, %115, %116 : vector<8x8xi1>, vector<8x8xf32>
      %118 = vector.extract_strided_slice %95 {offsets = [0, 0], sizes = [8, 16], strides = [1, 1]} : vector<8x64xf32> to vector<8x16xf32>
      %119 = vector.extract_strided_slice %92 {offsets = [0, 0], sizes = [8, 1], strides = [1, 1]} : vector<8x4xf32> to vector<8x1xf32>
      %120 = vector.broadcast %119 : vector<8x1xf32> to vector<8x16xf32>
      %121 = arith.mulf %118, %120 : vector<8x16xf32>
      %122 = vector.extract_strided_slice %90 {offsets = [0, 0], sizes = [16, 16], strides = [1, 1]} : vector<64x16xf32> to vector<16x16xf32>
      %123 = arith.mulf %111, %117 : vector<8x8xf32>
      %cst_59 = arith.constant dense<0.000000e+00> : vector<8x16xf32>
      %124 = tpu.matmul %123, %121, %cst_59 {dimension_numbers = #tpu.dot_dimension_numbers<[1], [0], [0], [1], [0, 0, 1, 1], [], []>} : vector<8x8xf32>, vector<8x16xf32>, vector<8x16xf32> -> vector<8x16xf32>
      %cst_60 = arith.constant dense<0.000000e+00> : vector<8x16xf32>
      %125 = tpu.matmul %94, %122, %cst_60 {dimension_numbers = #tpu.dot_dimension_numbers<[1], [1], [0], [0], [0, 0, 1, 0], [], []>} : vector<8x16xf32>, vector<16x16xf32>, vector<8x16xf32> -> vector<8x16xf32>
      %126 = math.exp %112 : vector<8x1xf32>
      %127 = vector.broadcast %126 : vector<8x1xf32> to vector<8x16xf32>
      %128 = arith.mulf %125, %127 : vector<8x16xf32>
      %129 = arith.addf %124, %128 : vector<8x16xf32>
      %130 = vector.broadcast %113 : vector<1x1xf32> to vector<8x1xf32>
      %131 = arith.subf %130, %112 : vector<8x1xf32>
      %132 = math.exp %131 : vector<8x1xf32>
      %133 = vector.broadcast %132 : vector<8x1xf32> to vector<8x16xf32>
      %134 = arith.mulf %121, %133 : vector<8x16xf32>
      %cst_61 = arith.constant dense<0.000000e+00> : vector<16x16xf32>
      %135 = tpu.matmul %134, %93, %cst_61 {dimension_numbers = #tpu.dot_dimension_numbers<[0], [0], [1], [1], [0, 1, 1, 1], [], []>} : vector<8x16xf32>, vector<8x16xf32>, vector<16x16xf32> -> vector<16x16xf32>
      %136 = math.exp %113 : vector<1x1xf32>
      %137 = vector.broadcast %136 : vector<1x1xf32> to vector<16x16xf32>
      %138 = arith.mulf %137, %122 : vector<16x16xf32>
      %139 = arith.addf %138, %135 : vector<16x16xf32>
      %140 = vector.extract_strided_slice %96 {offsets = [0, 1], sizes = [8, 1], strides = [1, 1]} : vector<8x4xf32> to vector<8x1xf32>
      %141 = vector.extract_strided_slice %96 {offsets = [7, 1], sizes = [1, 1], strides = [1, 1]} : vector<8x4xf32> to vector<1x1xf32>
      %142 = vector.extract_strided_slice %110 {offsets = [0, 8], sizes = [8, 8], strides = [1, 1]} : vector<8x32xf32> to vector<8x8xf32>
      %143 = math.exp %142 : vector<8x8xf32>
      %cst_62 = arith.constant 0.000000e+00 : f32
      %144 = vector.broadcast %cst_62 : f32 to vector<8x8xf32>
      %145 = arith.select %74, %143, %144 : vector<8x8xi1>, vector<8x8xf32>
      %146 = vector.extract_strided_slice %95 {offsets = [0, 16], sizes = [8, 16], strides = [1, 1]} : vector<8x64xf32> to vector<8x16xf32>
      %147 = vector.extract_strided_slice %92 {offsets = [0, 1], sizes = [8, 1], strides = [1, 1]} : vector<8x4xf32> to vector<8x1xf32>
      %148 = vector.broadcast %147 : vector<8x1xf32> to vector<8x16xf32>
      %149 = arith.mulf %146, %148 : vector<8x16xf32>
      %150 = vector.extract_strided_slice %90 {offsets = [16, 0], sizes = [16, 16], strides = [1, 1]} : vector<64x16xf32> to vector<16x16xf32>
      %151 = arith.mulf %111, %145 : vector<8x8xf32>
      %cst_63 = arith.constant dense<0.000000e+00> : vector<8x16xf32>
      %152 = tpu.matmul %151, %149, %cst_63 {dimension_numbers = #tpu.dot_dimension_numbers<[1], [0], [0], [1], [0, 0, 1, 1], [], []>} : vector<8x8xf32>, vector<8x16xf32>, vector<8x16xf32> -> vector<8x16xf32>
      %cst_64 = arith.constant dense<0.000000e+00> : vector<8x16xf32>
      %153 = tpu.matmul %94, %150, %cst_64 {dimension_numbers = #tpu.dot_dimension_numbers<[1], [1], [0], [0], [0, 0, 1, 0], [], []>} : vector<8x16xf32>, vector<16x16xf32>, vector<8x16xf32> -> vector<8x16xf32>
      %154 = math.exp %140 : vector<8x1xf32>
      %155 = vector.broadcast %154 : vector<8x1xf32> to vector<8x16xf32>
      %156 = arith.mulf %153, %155 : vector<8x16xf32>
      %157 = arith.addf %152, %156 : vector<8x16xf32>
      %158 = vector.broadcast %141 : vector<1x1xf32> to vector<8x1xf32>
      %159 = arith.subf %158, %140 : vector<8x1xf32>
      %160 = math.exp %159 : vector<8x1xf32>
      %161 = vector.broadcast %160 : vector<8x1xf32> to vector<8x16xf32>
      %162 = arith.mulf %149, %161 : vector<8x16xf32>
      %cst_65 = arith.constant dense<0.000000e+00> : vector<16x16xf32>
      %163 = tpu.matmul %162, %93, %cst_65 {dimension_numbers = #tpu.dot_dimension_numbers<[0], [0], [1], [1], [0, 1, 1, 1], [], []>} : vector<8x16xf32>, vector<8x16xf32>, vector<16x16xf32> -> vector<16x16xf32>
      %164 = math.exp %141 : vector<1x1xf32>
      %165 = vector.broadcast %164 : vector<1x1xf32> to vector<16x16xf32>
      %166 = arith.mulf %165, %150 : vector<16x16xf32>
      %167 = arith.addf %166, %163 : vector<16x16xf32>
      %168 = vector.extract_strided_slice %96 {offsets = [0, 2], sizes = [8, 1], strides = [1, 1]} : vector<8x4xf32> to vector<8x1xf32>
      %169 = vector.extract_strided_slice %96 {offsets = [7, 2], sizes = [1, 1], strides = [1, 1]} : vector<8x4xf32> to vector<1x1xf32>
      %170 = vector.extract_strided_slice %110 {offsets = [0, 16], sizes = [8, 8], strides = [1, 1]} : vector<8x32xf32> to vector<8x8xf32>
      %171 = math.exp %170 : vector<8x8xf32>
      %cst_66 = arith.constant 0.000000e+00 : f32
      %172 = vector.broadcast %cst_66 : f32 to vector<8x8xf32>
      %173 = arith.select %74, %171, %172 : vector<8x8xi1>, vector<8x8xf32>
      %174 = vector.extract_strided_slice %95 {offsets = [0, 32], sizes = [8, 16], strides = [1, 1]} : vector<8x64xf32> to vector<8x16xf32>
      %175 = vector.extract_strided_slice %92 {offsets = [0, 2], sizes = [8, 1], strides = [1, 1]} : vector<8x4xf32> to vector<8x1xf32>
      %176 = vector.broadcast %175 : vector<8x1xf32> to vector<8x16xf32>
      %177 = arith.mulf %174, %176 : vector<8x16xf32>
      %178 = vector.extract_strided_slice %90 {offsets = [32, 0], sizes = [16, 16], strides = [1, 1]} : vector<64x16xf32> to vector<16x16xf32>
      %179 = arith.mulf %111, %173 : vector<8x8xf32>
      %cst_67 = arith.constant dense<0.000000e+00> : vector<8x16xf32>
      %180 = tpu.matmul %179, %177, %cst_67 {dimension_numbers = #tpu.dot_dimension_numbers<[1], [0], [0], [1], [0, 0, 1, 1], [], []>} : vector<8x8xf32>, vector<8x16xf32>, vector<8x16xf32> -> vector<8x16xf32>
      %cst_68 = arith.constant dense<0.000000e+00> : vector<8x16xf32>
      %181 = tpu.matmul %94, %178, %cst_68 {dimension_numbers = #tpu.dot_dimension_numbers<[1], [1], [0], [0], [0, 0, 1, 0], [], []>} : vector<8x16xf32>, vector<16x16xf32>, vector<8x16xf32> -> vector<8x16xf32>
      %182 = math.exp %168 : vector<8x1xf32>
      %183 = vector.broadcast %182 : vector<8x1xf32> to vector<8x16xf32>
      %184 = arith.mulf %181, %183 : vector<8x16xf32>
      %185 = arith.addf %180, %184 : vector<8x16xf32>
      %186 = vector.broadcast %169 : vector<1x1xf32> to vector<8x1xf32>
      %187 = arith.subf %186, %168 : vector<8x1xf32>
      %188 = math.exp %187 : vector<8x1xf32>
      %189 = vector.broadcast %188 : vector<8x1xf32> to vector<8x16xf32>
      %190 = arith.mulf %177, %189 : vector<8x16xf32>
      %cst_69 = arith.constant dense<0.000000e+00> : vector<16x16xf32>
      %191 = tpu.matmul %190, %93, %cst_69 {dimension_numbers = #tpu.dot_dimension_numbers<[0], [0], [1], [1], [0, 1, 1, 1], [], []>} : vector<8x16xf32>, vector<8x16xf32>, vector<16x16xf32> -> vector<16x16xf32>
      %192 = math.exp %169 : vector<1x1xf32>
      %193 = vector.broadcast %192 : vector<1x1xf32> to vector<16x16xf32>
      %194 = arith.mulf %193, %178 : vector<16x16xf32>
      %195 = arith.addf %194, %191 : vector<16x16xf32>
      %196 = vector.extract_strided_slice %96 {offsets = [0, 3], sizes = [8, 1], strides = [1, 1]} : vector<8x4xf32> to vector<8x1xf32>
      %197 = vector.extract_strided_slice %96 {offsets = [7, 3], sizes = [1, 1], strides = [1, 1]} : vector<8x4xf32> to vector<1x1xf32>
      %198 = vector.extract_strided_slice %110 {offsets = [0, 24], sizes = [8, 8], strides = [1, 1]} : vector<8x32xf32> to vector<8x8xf32>
      %199 = math.exp %198 : vector<8x8xf32>
      %cst_70 = arith.constant 0.000000e+00 : f32
      %200 = vector.broadcast %cst_70 : f32 to vector<8x8xf32>
      %201 = arith.select %74, %199, %200 : vector<8x8xi1>, vector<8x8xf32>
      %202 = vector.extract_strided_slice %95 {offsets = [0, 48], sizes = [8, 16], strides = [1, 1]} : vector<8x64xf32> to vector<8x16xf32>
      %203 = vector.extract_strided_slice %92 {offsets = [0, 3], sizes = [8, 1], strides = [1, 1]} : vector<8x4xf32> to vector<8x1xf32>
      %204 = vector.broadcast %203 : vector<8x1xf32> to vector<8x16xf32>
      %205 = arith.mulf %202, %204 : vector<8x16xf32>
      %206 = vector.extract_strided_slice %90 {offsets = [48, 0], sizes = [16, 16], strides = [1, 1]} : vector<64x16xf32> to vector<16x16xf32>
      %207 = arith.mulf %111, %201 : vector<8x8xf32>
      %cst_71 = arith.constant dense<0.000000e+00> : vector<8x16xf32>
      %208 = tpu.matmul %207, %205, %cst_71 {dimension_numbers = #tpu.dot_dimension_numbers<[1], [0], [0], [1], [0, 0, 1, 1], [], []>} : vector<8x8xf32>, vector<8x16xf32>, vector<8x16xf32> -> vector<8x16xf32>
      %cst_72 = arith.constant dense<0.000000e+00> : vector<8x16xf32>
      %209 = tpu.matmul %94, %206, %cst_72 {dimension_numbers = #tpu.dot_dimension_numbers<[1], [1], [0], [0], [0, 0, 1, 0], [], []>} : vector<8x16xf32>, vector<16x16xf32>, vector<8x16xf32> -> vector<8x16xf32>
      %210 = math.exp %196 : vector<8x1xf32>
      %211 = vector.broadcast %210 : vector<8x1xf32> to vector<8x16xf32>
      %212 = arith.mulf %209, %211 : vector<8x16xf32>
      %213 = arith.addf %208, %212 : vector<8x16xf32>
      %214 = vector.broadcast %197 : vector<1x1xf32> to vector<8x1xf32>
      %215 = arith.subf %214, %196 : vector<8x1xf32>
      %216 = math.exp %215 : vector<8x1xf32>
      %217 = vector.broadcast %216 : vector<8x1xf32> to vector<8x16xf32>
      %218 = arith.mulf %205, %217 : vector<8x16xf32>
      %cst_73 = arith.constant dense<0.000000e+00> : vector<16x16xf32>
      %219 = tpu.matmul %218, %93, %cst_73 {dimension_numbers = #tpu.dot_dimension_numbers<[0], [0], [1], [1], [0, 1, 1, 1], [], []>} : vector<8x16xf32>, vector<8x16xf32>, vector<16x16xf32> -> vector<16x16xf32>
      %220 = math.exp %197 : vector<1x1xf32>
      %221 = vector.broadcast %220 : vector<1x1xf32> to vector<16x16xf32>
      %222 = arith.mulf %221, %206 : vector<16x16xf32>
      %223 = arith.addf %222, %219 : vector<16x16xf32>
      %224 = tpu.concatenate %139, %167, %195, %223 in 0 : vector<16x16xf32>, vector<16x16xf32>, vector<16x16xf32>, vector<16x16xf32> -> vector<64x16xf32>
      %225 = tpu.concatenate %129, %157, %185, %213 in 1 : vector<8x16xf32>, vector<8x16xf32>, vector<8x16xf32>, vector<8x16xf32> -> vector<8x64xf32>
      %226 = vector.extract_strided_slice %65 {offsets = [8, 0], sizes = [8, 4], strides = [1, 1]} : vector<16x4xf32> to vector<8x4xf32>
      %227 = vector.extract_strided_slice %59 {offsets = [8, 0], sizes = [8, 4], strides = [1, 1]} : vector<16x4xf32> to vector<8x4xf32>
      %228 = vector.extract_strided_slice %48 {offsets = [8, 0], sizes = [8, 16], strides = [1, 1]} : vector<16x16xf32> to vector<8x16xf32>
      %229 = vector.extract_strided_slice %49 {offsets = [8, 0], sizes = [8, 16], strides = [1, 1]} : vector<16x16xf32> to vector<8x16xf32>
      %230 = vector.extract_strided_slice %arg16 {offsets = [8, 0], sizes = [8, 64], strides = [1, 1]} : vector<16x64xf32> to vector<8x64xf32>
      %cst_74 = arith.constant dense<0.000000e+00> : vector<8x4xf32>
      %231 = tpu.matmul %70, %226, %cst_74 {dimension_numbers = #tpu.dot_dimension_numbers<[1], [0], [0], [1], [0, 0, 1, 1], [], []>} : vector<8x8xf32>, vector<8x4xf32>, vector<8x4xf32> -> vector<8x4xf32>
      %232 = vector.extract_strided_slice %226 {offsets = [0, 0], sizes = [8, 1], strides = [1, 1]} : vector<8x4xf32> to vector<8x1xf32>
      %233 = vector.broadcast %232 : vector<8x1xf32> to vector<8x8xf32>
      %234 = arith.mulf %233, %73 : vector<8x8xf32>
      %235 = vector.extract_strided_slice %226 {offsets = [0, 1], sizes = [8, 1], strides = [1, 1]} : vector<8x4xf32> to vector<8x1xf32>
      %236 = vector.broadcast %235 : vector<8x1xf32> to vector<8x8xf32>
      %237 = arith.mulf %236, %73 : vector<8x8xf32>
      %238 = vector.extract_strided_slice %226 {offsets = [0, 2], sizes = [8, 1], strides = [1, 1]} : vector<8x4xf32> to vector<8x1xf32>
      %239 = vector.broadcast %238 : vector<8x1xf32> to vector<8x8xf32>
      %240 = arith.mulf %239, %73 : vector<8x8xf32>
      %241 = vector.extract_strided_slice %226 {offsets = [0, 3], sizes = [8, 1], strides = [1, 1]} : vector<8x4xf32> to vector<8x1xf32>
      %242 = vector.broadcast %241 : vector<8x1xf32> to vector<8x8xf32>
      %243 = arith.mulf %242, %73 : vector<8x8xf32>
      %244 = tpu.concatenate %234, %237, %240, %243 in 1 : vector<8x8xf32>, vector<8x8xf32>, vector<8x8xf32>, vector<8x8xf32> -> vector<8x32xf32>
      %cst_75 = arith.constant dense<0.000000e+00> : vector<8x32xf32>
      %245 = tpu.matmul %70, %244, %cst_75 {dimension_numbers = #tpu.dot_dimension_numbers<[1], [0], [0], [1], [0, 0, 1, 1], [], []>} : vector<8x8xf32>, vector<8x32xf32>, vector<8x32xf32> -> vector<8x32xf32>
      %cst_76 = arith.constant dense<0.000000e+00> : vector<8x8xf32>
      %246 = tpu.matmul %229, %228, %cst_76 {dimension_numbers = #tpu.dot_dimension_numbers<[1], [1], [0], [0], [0, 0, 1, 0], [], []>} : vector<8x16xf32>, vector<8x16xf32>, vector<8x8xf32> -> vector<8x8xf32>
      %247 = vector.extract_strided_slice %231 {offsets = [0, 0], sizes = [8, 1], strides = [1, 1]} : vector<8x4xf32> to vector<8x1xf32>
      %248 = vector.extract_strided_slice %231 {offsets = [7, 0], sizes = [1, 1], strides = [1, 1]} : vector<8x4xf32> to vector<1x1xf32>
      %249 = vector.extract_strided_slice %245 {offsets = [0, 0], sizes = [8, 8], strides = [1, 1]} : vector<8x32xf32> to vector<8x8xf32>
      %250 = math.exp %249 : vector<8x8xf32>
      %cst_77 = arith.constant 0.000000e+00 : f32
      %251 = vector.broadcast %cst_77 : f32 to vector<8x8xf32>
      %252 = arith.select %74, %250, %251 : vector<8x8xi1>, vector<8x8xf32>
      %253 = vector.extract_strided_slice %230 {offsets = [0, 0], sizes = [8, 16], strides = [1, 1]} : vector<8x64xf32> to vector<8x16xf32>
      %254 = vector.extract_strided_slice %227 {offsets = [0, 0], sizes = [8, 1], strides = [1, 1]} : vector<8x4xf32> to vector<8x1xf32>
      %255 = vector.broadcast %254 : vector<8x1xf32> to vector<8x16xf32>
      %256 = arith.mulf %253, %255 : vector<8x16xf32>
      %257 = vector.extract_strided_slice %224 {offsets = [0, 0], sizes = [16, 16], strides = [1, 1]} : vector<64x16xf32> to vector<16x16xf32>
      %258 = arith.mulf %246, %252 : vector<8x8xf32>
      %cst_78 = arith.constant dense<0.000000e+00> : vector<8x16xf32>
      %259 = tpu.matmul %258, %256, %cst_78 {dimension_numbers = #tpu.dot_dimension_numbers<[1], [0], [0], [1], [0, 0, 1, 1], [], []>} : vector<8x8xf32>, vector<8x16xf32>, vector<8x16xf32> -> vector<8x16xf32>
      %cst_79 = arith.constant dense<0.000000e+00> : vector<8x16xf32>
      %260 = tpu.matmul %229, %257, %cst_79 {dimension_numbers = #tpu.dot_dimension_numbers<[1], [1], [0], [0], [0, 0, 1, 0], [], []>} : vector<8x16xf32>, vector<16x16xf32>, vector<8x16xf32> -> vector<8x16xf32>
      %261 = math.exp %247 : vector<8x1xf32>
      %262 = vector.broadcast %261 : vector<8x1xf32> to vector<8x16xf32>
      %263 = arith.mulf %260, %262 : vector<8x16xf32>
      %264 = arith.addf %259, %263 : vector<8x16xf32>
      %265 = vector.broadcast %248 : vector<1x1xf32> to vector<8x1xf32>
      %266 = arith.subf %265, %247 : vector<8x1xf32>
      %267 = math.exp %266 : vector<8x1xf32>
      %268 = vector.broadcast %267 : vector<8x1xf32> to vector<8x16xf32>
      %269 = arith.mulf %256, %268 : vector<8x16xf32>
      %cst_80 = arith.constant dense<0.000000e+00> : vector<16x16xf32>
      %270 = tpu.matmul %269, %228, %cst_80 {dimension_numbers = #tpu.dot_dimension_numbers<[0], [0], [1], [1], [0, 1, 1, 1], [], []>} : vector<8x16xf32>, vector<8x16xf32>, vector<16x16xf32> -> vector<16x16xf32>
      %271 = math.exp %248 : vector<1x1xf32>
      %272 = vector.broadcast %271 : vector<1x1xf32> to vector<16x16xf32>
      %273 = arith.mulf %272, %257 : vector<16x16xf32>
      %274 = arith.addf %273, %270 : vector<16x16xf32>
      %275 = vector.extract_strided_slice %231 {offsets = [0, 1], sizes = [8, 1], strides = [1, 1]} : vector<8x4xf32> to vector<8x1xf32>
      %276 = vector.extract_strided_slice %231 {offsets = [7, 1], sizes = [1, 1], strides = [1, 1]} : vector<8x4xf32> to vector<1x1xf32>
      %277 = vector.extract_strided_slice %245 {offsets = [0, 8], sizes = [8, 8], strides = [1, 1]} : vector<8x32xf32> to vector<8x8xf32>
      %278 = math.exp %277 : vector<8x8xf32>
      %cst_81 = arith.constant 0.000000e+00 : f32
      %279 = vector.broadcast %cst_81 : f32 to vector<8x8xf32>
      %280 = arith.select %74, %278, %279 : vector<8x8xi1>, vector<8x8xf32>
      %281 = vector.extract_strided_slice %230 {offsets = [0, 16], sizes = [8, 16], strides = [1, 1]} : vector<8x64xf32> to vector<8x16xf32>
      %282 = vector.extract_strided_slice %227 {offsets = [0, 1], sizes = [8, 1], strides = [1, 1]} : vector<8x4xf32> to vector<8x1xf32>
      %283 = vector.broadcast %282 : vector<8x1xf32> to vector<8x16xf32>
      %284 = arith.mulf %281, %283 : vector<8x16xf32>
      %285 = vector.extract_strided_slice %224 {offsets = [16, 0], sizes = [16, 16], strides = [1, 1]} : vector<64x16xf32> to vector<16x16xf32>
      %286 = arith.mulf %246, %280 : vector<8x8xf32>
      %cst_82 = arith.constant dense<0.000000e+00> : vector<8x16xf32>
      %287 = tpu.matmul %286, %284, %cst_82 {dimension_numbers = #tpu.dot_dimension_numbers<[1], [0], [0], [1], [0, 0, 1, 1], [], []>} : vector<8x8xf32>, vector<8x16xf32>, vector<8x16xf32> -> vector<8x16xf32>
      %cst_83 = arith.constant dense<0.000000e+00> : vector<8x16xf32>
      %288 = tpu.matmul %229, %285, %cst_83 {dimension_numbers = #tpu.dot_dimension_numbers<[1], [1], [0], [0], [0, 0, 1, 0], [], []>} : vector<8x16xf32>, vector<16x16xf32>, vector<8x16xf32> -> vector<8x16xf32>
      %289 = math.exp %275 : vector<8x1xf32>
      %290 = vector.broadcast %289 : vector<8x1xf32> to vector<8x16xf32>
      %291 = arith.mulf %288, %290 : vector<8x16xf32>
      %292 = arith.addf %287, %291 : vector<8x16xf32>
      %293 = vector.broadcast %276 : vector<1x1xf32> to vector<8x1xf32>
      %294 = arith.subf %293, %275 : vector<8x1xf32>
      %295 = math.exp %294 : vector<8x1xf32>
      %296 = vector.broadcast %295 : vector<8x1xf32> to vector<8x16xf32>
      %297 = arith.mulf %284, %296 : vector<8x16xf32>
      %cst_84 = arith.constant dense<0.000000e+00> : vector<16x16xf32>
      %298 = tpu.matmul %297, %228, %cst_84 {dimension_numbers = #tpu.dot_dimension_numbers<[0], [0], [1], [1], [0, 1, 1, 1], [], []>} : vector<8x16xf32>, vector<8x16xf32>, vector<16x16xf32> -> vector<16x16xf32>
      %299 = math.exp %276 : vector<1x1xf32>
      %300 = vector.broadcast %299 : vector<1x1xf32> to vector<16x16xf32>
      %301 = arith.mulf %300, %285 : vector<16x16xf32>
      %302 = arith.addf %301, %298 : vector<16x16xf32>
      %303 = vector.extract_strided_slice %231 {offsets = [0, 2], sizes = [8, 1], strides = [1, 1]} : vector<8x4xf32> to vector<8x1xf32>
      %304 = vector.extract_strided_slice %231 {offsets = [7, 2], sizes = [1, 1], strides = [1, 1]} : vector<8x4xf32> to vector<1x1xf32>
      %305 = vector.extract_strided_slice %245 {offsets = [0, 16], sizes = [8, 8], strides = [1, 1]} : vector<8x32xf32> to vector<8x8xf32>
      %306 = math.exp %305 : vector<8x8xf32>
      %cst_85 = arith.constant 0.000000e+00 : f32
      %307 = vector.broadcast %cst_85 : f32 to vector<8x8xf32>
      %308 = arith.select %74, %306, %307 : vector<8x8xi1>, vector<8x8xf32>
      %309 = vector.extract_strided_slice %230 {offsets = [0, 32], sizes = [8, 16], strides = [1, 1]} : vector<8x64xf32> to vector<8x16xf32>
      %310 = vector.extract_strided_slice %227 {offsets = [0, 2], sizes = [8, 1], strides = [1, 1]} : vector<8x4xf32> to vector<8x1xf32>
      %311 = vector.broadcast %310 : vector<8x1xf32> to vector<8x16xf32>
      %312 = arith.mulf %309, %311 : vector<8x16xf32>
      %313 = vector.extract_strided_slice %224 {offsets = [32, 0], sizes = [16, 16], strides = [1, 1]} : vector<64x16xf32> to vector<16x16xf32>
      %314 = arith.mulf %246, %308 : vector<8x8xf32>
      %cst_86 = arith.constant dense<0.000000e+00> : vector<8x16xf32>
      %315 = tpu.matmul %314, %312, %cst_86 {dimension_numbers = #tpu.dot_dimension_numbers<[1], [0], [0], [1], [0, 0, 1, 1], [], []>} : vector<8x8xf32>, vector<8x16xf32>, vector<8x16xf32> -> vector<8x16xf32>
      %cst_87 = arith.constant dense<0.000000e+00> : vector<8x16xf32>
      %316 = tpu.matmul %229, %313, %cst_87 {dimension_numbers = #tpu.dot_dimension_numbers<[1], [1], [0], [0], [0, 0, 1, 0], [], []>} : vector<8x16xf32>, vector<16x16xf32>, vector<8x16xf32> -> vector<8x16xf32>
      %317 = math.exp %303 : vector<8x1xf32>
      %318 = vector.broadcast %317 : vector<8x1xf32> to vector<8x16xf32>
      %319 = arith.mulf %316, %318 : vector<8x16xf32>
      %320 = arith.addf %315, %319 : vector<8x16xf32>
      %321 = vector.broadcast %304 : vector<1x1xf32> to vector<8x1xf32>
      %322 = arith.subf %321, %303 : vector<8x1xf32>
      %323 = math.exp %322 : vector<8x1xf32>
      %324 = vector.broadcast %323 : vector<8x1xf32> to vector<8x16xf32>
      %325 = arith.mulf %312, %324 : vector<8x16xf32>
      %cst_88 = arith.constant dense<0.000000e+00> : vector<16x16xf32>
      %326 = tpu.matmul %325, %228, %cst_88 {dimension_numbers = #tpu.dot_dimension_numbers<[0], [0], [1], [1], [0, 1, 1, 1], [], []>} : vector<8x16xf32>, vector<8x16xf32>, vector<16x16xf32> -> vector<16x16xf32>
      %327 = math.exp %304 : vector<1x1xf32>
      %328 = vector.broadcast %327 : vector<1x1xf32> to vector<16x16xf32>
      %329 = arith.mulf %328, %313 : vector<16x16xf32>
      %330 = arith.addf %329, %326 : vector<16x16xf32>
      %331 = vector.extract_strided_slice %231 {offsets = [0, 3], sizes = [8, 1], strides = [1, 1]} : vector<8x4xf32> to vector<8x1xf32>
      %332 = vector.extract_strided_slice %231 {offsets = [7, 3], sizes = [1, 1], strides = [1, 1]} : vector<8x4xf32> to vector<1x1xf32>
      %333 = vector.extract_strided_slice %245 {offsets = [0, 24], sizes = [8, 8], strides = [1, 1]} : vector<8x32xf32> to vector<8x8xf32>
      %334 = math.exp %333 : vector<8x8xf32>
      %cst_89 = arith.constant 0.000000e+00 : f32
      %335 = vector.broadcast %cst_89 : f32 to vector<8x8xf32>
      %336 = arith.select %74, %334, %335 : vector<8x8xi1>, vector<8x8xf32>
      %337 = vector.extract_strided_slice %230 {offsets = [0, 48], sizes = [8, 16], strides = [1, 1]} : vector<8x64xf32> to vector<8x16xf32>
      %338 = vector.extract_strided_slice %227 {offsets = [0, 3], sizes = [8, 1], strides = [1, 1]} : vector<8x4xf32> to vector<8x1xf32>
      %339 = vector.broadcast %338 : vector<8x1xf32> to vector<8x16xf32>
      %340 = arith.mulf %337, %339 : vector<8x16xf32>
      %341 = vector.extract_strided_slice %224 {offsets = [48, 0], sizes = [16, 16], strides = [1, 1]} : vector<64x16xf32> to vector<16x16xf32>
      %342 = arith.mulf %246, %336 : vector<8x8xf32>
      %cst_90 = arith.constant dense<0.000000e+00> : vector<8x16xf32>
      %343 = tpu.matmul %342, %340, %cst_90 {dimension_numbers = #tpu.dot_dimension_numbers<[1], [0], [0], [1], [0, 0, 1, 1], [], []>} : vector<8x8xf32>, vector<8x16xf32>, vector<8x16xf32> -> vector<8x16xf32>
      %cst_91 = arith.constant dense<0.000000e+00> : vector<8x16xf32>
      %344 = tpu.matmul %229, %341, %cst_91 {dimension_numbers = #tpu.dot_dimension_numbers<[1], [1], [0], [0], [0, 0, 1, 0], [], []>} : vector<8x16xf32>, vector<16x16xf32>, vector<8x16xf32> -> vector<8x16xf32>
      %345 = math.exp %331 : vector<8x1xf32>
      %346 = vector.broadcast %345 : vector<8x1xf32> to vector<8x16xf32>
      %347 = arith.mulf %344, %346 : vector<8x16xf32>
      %348 = arith.addf %343, %347 : vector<8x16xf32>
      %349 = vector.broadcast %332 : vector<1x1xf32> to vector<8x1xf32>
      %350 = arith.subf %349, %331 : vector<8x1xf32>
      %351 = math.exp %350 : vector<8x1xf32>
      %352 = vector.broadcast %351 : vector<8x1xf32> to vector<8x16xf32>
      %353 = arith.mulf %340, %352 : vector<8x16xf32>
      %cst_92 = arith.constant dense<0.000000e+00> : vector<16x16xf32>
      %354 = tpu.matmul %353, %228, %cst_92 {dimension_numbers = #tpu.dot_dimension_numbers<[0], [0], [1], [1], [0, 1, 1, 1], [], []>} : vector<8x16xf32>, vector<8x16xf32>, vector<16x16xf32> -> vector<16x16xf32>
      %355 = math.exp %332 : vector<1x1xf32>
      %356 = vector.broadcast %355 : vector<1x1xf32> to vector<16x16xf32>
      %357 = arith.mulf %356, %341 : vector<16x16xf32>
      %358 = arith.addf %357, %354 : vector<16x16xf32>
      %359 = tpu.concatenate %274, %302, %330, %358 in 0 : vector<16x16xf32>, vector<16x16xf32>, vector<16x16xf32>, vector<16x16xf32> -> vector<64x16xf32>
      %360 = tpu.concatenate %264, %292, %320, %348 in 1 : vector<8x16xf32>, vector<8x16xf32>, vector<8x16xf32>, vector<8x16xf32> -> vector<8x64xf32>
      %361 = tpu.concatenate %225, %360 in 0 : vector<8x64xf32>, vector<8x64xf32> -> vector<16x64xf32>
      scf.yield %361, %359 : vector<16x64xf32>, vector<64x16xf32>
    }
    %c0_43 = arith.constant 0 : index
    %c0_44 = arith.constant 0 : index
    %78 = vector.load %arg9[%c0_43, %c0_44] : memref<1x64xf32, #tpu.memory_space<vmem>>, vector<1x64xf32>
    %79 = vector.broadcast %78 : vector<1x64xf32> to vector<16x64xf32>
    %80 = arith.mulf %47, %79 : vector<16x64xf32>
    %81 = arith.addf %77#0, %80 : vector<16x64xf32>
    %c0_45 = arith.constant 0 : index
    %c0_46 = arith.constant 0 : index
    %82 = vector.load %arg10[%c0_45, %c0_46] : memref<64x32xf32, #tpu.memory_space<vmem>>, vector<64x32xf32>
    %cst_47 = arith.constant dense<0.000000e+00> : vector<16x32xf32>
    %83 = tpu.matmul %81, %82, %cst_47 {dimension_numbers = #tpu.dot_dimension_numbers<[1], [0], [0], [1], [0, 0, 1, 1], [], []>} : vector<16x64xf32>, vector<64x32xf32>, vector<16x32xf32> -> vector<16x32xf32>
    %c0_48 = arith.constant 0 : index
    %c0_49 = arith.constant 0 : index
    %c0_50 = arith.constant 0 : index
    %84 = vector.load %arg11[%c0_48, %c0_49, %c0_50] : memref<1x16x32xf32, #tpu.memory_space<vmem>>, vector<1x16x32xf32>
    %85 = vector.shape_cast %84 : vector<1x16x32xf32> to vector<16x32xf32>
    %86 = vector.shape_cast %83 : vector<16x32xf32> to vector<1x16x32xf32>
    tpu.vector_store %arg11[%c0_48, %c0_49, %c0_50], %86 {strides = array<i32>} : memref<1x16x32xf32, #tpu.memory_space<vmem>>, vector<1x16x32xf32>,
    %c0_51 = arith.constant 0 : index
    %c0_52 = arith.constant 0 : index
    %c0_53 = arith.constant 0 : index
    %87 = vector.load %arg13[%c0_51, %c0_52, %c0_53] : memref<1x64x16xf32, #tpu.memory_space<vmem>>, vector<1x64x16xf32>
    %88 = vector.shape_cast %87 : vector<1x64x16xf32> to vector<64x16xf32>
    %89 = vector.shape_cast %77#1 : vector<64x16xf32> to vector<1x64x16xf32>
    tpu.vector_store %arg13[%c0_51, %c0_52, %c0_53], %89 {strides = array<i32>} : memref<1x64x16xf32, #tpu.memory_space<vmem>>, vector<1x64x16xf32>,
    return
  }
  func.func @transform_0(%arg0: i32) -> (i32, i32, i32) {
    %c0_i32 = arith.constant 0 : i32
    %c0_i32_0 = arith.constant 0 : i32
    %c0_i32_1 = arith.constant 0 : i32
    return %arg0, %c0_i32, %c0_i32_0 : i32, i32, i32
  }
  func.func @transform_1(%arg0: i32) -> (i32, i32) {
    %c0_i32 = arith.constant 0 : i32
    %c0_i32_0 = arith.constant 0 : i32
    %c0_i32_1 = arith.constant 0 : i32
    return %c0_i32, %c0_i32_0 : i32, i32
  }
  func.func @transform_2(%arg0: i32) -> (i32, i32) {
    %c0_i32 = arith.constant 0 : i32
    %c0_i32_0 = arith.constant 0 : i32
    %c0_i32_1 = arith.constant 0 : i32
    return %c0_i32, %c0_i32_0 : i32, i32
  }
  func.func @transform_3(%arg0: i32) -> (i32, i32) {
    %c0_i32 = arith.constant 0 : i32
    %c0_i32_0 = arith.constant 0 : i32
    %c0_i32_1 = arith.constant 0 : i32
    return %c0_i32, %c0_i32_0 : i32, i32
  }
  func.func @transform_4(%arg0: i32) -> (i32, i32) {
    %c0_i32 = arith.constant 0 : i32
    %c0_i32_0 = arith.constant 0 : i32
    %c0_i32_1 = arith.constant 0 : i32
    return %c0_i32, %c0_i32_0 : i32, i32
  }
  func.func @transform_5(%arg0: i32) -> (i32, i32) {
    %c0_i32 = arith.constant 0 : i32
    %c0_i32_0 = arith.constant 0 : i32
    %c0_i32_1 = arith.constant 0 : i32
    return %c0_i32, %c0_i32_0 : i32, i32
  }
  func.func @transform_6(%arg0: i32) -> (i32, i32) {
    %c0_i32 = arith.constant 0 : i32
    %c0_i32_0 = arith.constant 0 : i32
    %c0_i32_1 = arith.constant 0 : i32
    return %c0_i32, %c0_i32_0 : i32, i32
  }
  func.func @transform_7(%arg0: i32) -> (i32, i32) {
    %c0_i32 = arith.constant 0 : i32
    %c0_i32_0 = arith.constant 0 : i32
    %c0_i32_1 = arith.constant 0 : i32
    return %c0_i32, %c0_i32_0 : i32, i32
  }
  func.func @transform_8(%arg0: i32) -> (i32, i32) {
    %c0_i32 = arith.constant 0 : i32
    %c0_i32_0 = arith.constant 0 : i32
    %c0_i32_1 = arith.constant 0 : i32
    return %c0_i32, %c0_i32_0 : i32, i32
  }
  func.func @transform_9(%arg0: i32) -> (i32, i32) {
    %c0_i32 = arith.constant 0 : i32
    %c0_i32_0 = arith.constant 0 : i32
    %c0_i32_1 = arith.constant 0 : i32
    return %c0_i32, %c0_i32_0 : i32, i32
  }
  func.func @transform_10(%arg0: i32) -> (i32, i32, i32) {
    %c0_i32 = arith.constant 0 : i32
    %c0_i32_0 = arith.constant 0 : i32
    %c0_i32_1 = arith.constant 0 : i32
    return %arg0, %c0_i32, %c0_i32_0 : i32, i32, i32
  }
  func.func @transform_11(%arg0: i32) -> (i32, i32, i32) {
    %c0_i32 = arith.constant 0 : i32
    %c0_i32_0 = arith.constant 0 : i32
    %c0_i32_1 = arith.constant 0 : i32
    return %arg0, %c0_i32, %c0_i32_0 : i32, i32, i32
  }
  func.func @transform_12(%arg0: i32) -> (i32, i32, i32) {
    %c0_i32 = arith.constant 0 : i32
    %c0_i32_0 = arith.constant 0 : i32
    %c0_i32_1 = arith.constant 0 : i32
    return %arg0, %c0_i32, %c0_i32_0 : i32, i32, i32
  }
}

</mosaic_0001>

<llo_original>
// kernel: _lambda_.1
$region0: #{_lambda_.1}
  #allocation0 [shape = 'u32[]', space=smem, size = 0x4, offset = 0x4, fixed_abs, tag = 'smem constant byte address 0x4 - core index']
  #allocation1 [shape = 'u32[72,128]{1,0:T(1,128)}', space=vmem, size = 0x9000, scoped, tag = 'internal scratch']
  #allocation2 [shape = 'f32[19,96]{1,0:T(8,128)}', space=vmem, size = 0x3000, scoped, tag = 'scratch operand']
  %s0 = inlined_call_operand.vmem [shape: f32[2,16,32], index: 0, kind: input, shape index: {}]
  %s1 = inlined_call_operand.vmem [shape: f32[16,32], index: 1, kind: input, shape index: {}]
  %s2 = inlined_call_operand.vmem [shape: f32[32,96], index: 2, kind: input, shape index: {}]
  %s3 = inlined_call_operand.vmem [shape: f32[32,4], index: 3, kind: input, shape index: {}]
  %s4 = inlined_call_operand.vmem [shape: f32[4,96], index: 4, kind: input, shape index: {}]
  %s5 = inlined_call_operand.vmem [shape: f32[1,96], index: 5, kind: input, shape index: {}]
  %s6 = inlined_call_operand.vmem [shape: f32[1,4], index: 6, kind: input, shape index: {}]
  %s7 = inlined_call_operand.vmem [shape: f32[1,4], index: 7, kind: input, shape index: {}]
  %s8 = inlined_call_operand.vmem [shape: f32[1,64], index: 8, kind: input, shape index: {}]
  %s9 = inlined_call_operand.vmem [shape: f32[64,32], index: 9, kind: input, shape index: {}]
  %s10 = inlined_call_operand.hbm [shape: f32[2,16,32], index: 10, kind: output, shape index: {0}]
  %s11 = inlined_call_operand.hbm [shape: f32[2,4,96], index: 11, kind: output, shape index: {1}]
  %s12 = inlined_call_operand.hbm [shape: f32[2,64,16], index: 12, kind: output, shape index: {2}]
  %13 = xla_tuple %s10, %s11, %s12
  %s14 = sld [smem:[#allocation0]]
  $region96: #{_lambda_.1} parent=0
    _
  %s16 = ssub.s32 1, %s14
  %s17 = scalar_select 0, %s16, %s14
  $region1: #{_lambda_.1} parent=0
    #allocation3 [shape = 'u8[16384]{0}', space=vmem, size = 0x4000, scoped, tag = 'output window, operand 0']
    #allocation4 [shape = 's32[2]{0}', space=sflag, size = 0x8, scoped, tag = 'scoped memory for _lambda_.1']
    #allocation5 [shape = 'u8[4096]{0}', space=vmem, size = 0x1000, scoped, tag = 'output window, operand 1']
    #allocation6 [shape = 's32[2]{0}', space=sflag, size = 0x8, scoped, tag = 'scoped memory for _lambda_.1']
    #allocation7 [shape = 'u8[65536]{0}', space=vmem, size = 0x10000, scoped, tag = 'output window, operand 2']
    %18 = vsyncpa [#allocation4], 0
    %s19 = scalar_lea.sflag [#allocation4], 1
    %20 = vsyncpa %s19, 0
    %21 = vsyncpa [#allocation6], 0
    %s22 = scalar_lea.sflag [#allocation6], 1
    %23 = vsyncpa %s22, 0
    loop: start=0, step=1, limit=4
    $region2: #{_lambda_.1} parent=1 // loop_pre_header
      _
    $region3: #{_lambda_.1} parent=1 // loop_header
      %s25 = sphi 0, %s29
      %p26 = scmp.ge.s32.totalorder %s25, 4
      %s35 = sphi 0, %s37
      %s38 = sphi 0, %s35
      %s39 = sphi 0, %s38
      %s55 = sphi 0, %s39
      %s59 = sphi 0, %s59
      %s61 = sphi 0, %s59
      %s62 = sphi 0, %s61
      %s76 = sphi 0, %s62
      %s80 = sphi 0, %s80
      %s82 = sphi 0, %s80
      %s83 = sphi 0, %s82
      %s97 = sphi 0, %s83
      %s101 = sphi 0, %s101
      %s103 = sphi 0, %s101
      %s104 = sphi 0, %s103
      %s118 = sphi 0, %s104
      %s122 = sphi 0, %s122
      %s124 = sphi 0, %s122
      %s125 = sphi 0, %s124
      %s139 = sphi 0, %s125
      %s143 = sphi 0, %s143
      %s145 = sphi 0, %s143
      %s146 = sphi 0, %s145
      %s160 = sphi 0, %s146
      %s164 = sphi 0, %s164
      %s166 = sphi 0, %s164
      %s167 = sphi 0, %s166
      %s181 = sphi 0, %s167
      %s185 = sphi 0, %s185
      %s187 = sphi 0, %s185
      %s188 = sphi 0, %s187
      %s202 = sphi 0, %s188
      %s206 = sphi 0, %s206
      %s208 = sphi 0, %s206
      %s209 = sphi 0, %s208
      %s223 = sphi 0, %s209
      %s227 = sphi 0, %s227
      %s229 = sphi 0, %s227
      %s230 = sphi 0, %s229
      %s244 = sphi 0, %s230
      %s250 = sphi 0, %s252
      %s253 = sphi 0, %s250
      %s254 = sphi 0, %s253
      %s270 = sphi 0, %s254
      %s276 = sphi 0, %s278
      %s279 = sphi 0, %s276
      %s280 = sphi 0, %s279
      %s296 = sphi 0, %s280
      %s302 = sphi 0, %s304
      %s305 = sphi 0, %s302
      %s306 = sphi 0, %s305
      %s322 = sphi 0, %s306
    $region4: #{_lambda_.1} parent=1 // loop_header_branch
      %28 = sbr.rel (%p26) target = $region8
    $region5: #{_lambda_.1} parent=1 // loop_body
      %s30 = ssub.s32 %s25, 1
      %s31 = ssub.s32 %s25, 2
      %s32 = sadd.s32 %s25, 1
      %s33 = ssub.s32 %s25, %s32
      %p34 = scmp.eq.s32.totalorder %s33, 0
      %s36 = sadd.s32 %s35, 1
      %s37 = scalar_select %p34, %s35, %s36
      %p40 = pneg %p34
      %p41 = scmp.eq.s32.totalorder %s25, 1
      %p42 = por %p40, %p41
      %p43 = scmp.ne.s32.totalorder %s35, %s38
      %p44 = scmp.eq.s32.totalorder %s25, 0
      %p45 = por %p43, %p44
      %p46 = scmp.ne.s32.totalorder %s35, %s38
      %p47 = scmp.eq.s32.totalorder %s30, 1
      %p48 = por %p46, %p47
      %p49 = scmp.ne.s32.totalorder %s38, %s39
      %p50 = scmp.eq.s32.totalorder %s30, 0
      %p51 = por %p49, %p50
      %p52 = scmp.ne.s32.totalorder %s38, %s39
      %p53 = scmp.eq.s32.totalorder %s31, 1
      %p54 = por %p52, %p53
      %p56 = scmp.ne.s32.totalorder %s39, %s55
      %p57 = scmp.eq.s32.totalorder %s31, 0
      %p58 = por %p56, %p57
      %s60 = sadd.s32 %s59, 1
      %p63 = scmp.eq.s32.totalorder %s25, 1
      %p64 = scmp.ne.s32.totalorder %s59, %s61
      %p65 = scmp.eq.s32.totalorder %s25, 0
      %p66 = por %p64, %p65
      %p67 = scmp.ne.s32.totalorder %s59, %s61
      %p68 = scmp.eq.s32.totalorder %s30, 1
      %p69 = por %p67, %p68
      %p70 = scmp.ne.s32.totalorder %s61, %s62
      %p71 = scmp.eq.s32.totalorder %s30, 0
      %p72 = por %p70, %p71
      %p73 = scmp.ne.s32.totalorder %s61, %s62
      %p74 = scmp.eq.s32.totalorder %s31, 1
      %p75 = por %p73, %p74
      %p77 = scmp.ne.s32.totalorder %s62, %s76
      %p78 = scmp.eq.s32.totalorder %s31, 0
      %p79 = por %p77, %p78
      %s81 = sadd.s32 %s80, 1
      %p84 = scmp.eq.s32.totalorder %s25, 1
      %p85 = scmp.ne.s32.totalorder %s80, %s82
      %p86 = scmp.eq.s32.totalorder %s25, 0
      %p87 = por %p85, %p86
      %p88 = scmp.ne.s32.totalorder %s80, %s82
      %p89 = scmp.eq.s32.totalorder %s30, 1
      %p90 = por %p88, %p89
      %p91 = scmp.ne.s32.totalorder %s82, %s83
      %p92 = scmp.eq.s32.totalorder %s30, 0
      %p93 = por %p91, %p92
      %p94 = scmp.ne.s32.totalorder %s82, %s83
      %p95 = scmp.eq.s32.totalorder %s31, 1
      %p96 = por %p94, %p95
      %p98 = scmp.ne.s32.totalorder %s83, %s97
      %p99 = scmp.eq.s32.totalorder %s31, 0
      %p100 = por %p98, %p99
      %s102 = sadd.s32 %s101, 1
      %p105 = scmp.eq.s32.totalorder %s25, 1
      %p106 = scmp.ne.s32.totalorder %s101, %s103
      %p107 = scmp.eq.s32.totalorder %s25, 0
      %p108 = por %p106, %p107
      %p109 = scmp.ne.s32.totalorder %s101, %s103
      %p110 = scmp.eq.s32.totalorder %s30, 1
      %p111 = por %p109, %p110
      %p112 = scmp.ne.s32.totalorder %s103, %s104
      %p113 = scmp.eq.s32.totalorder %s30, 0
      %p114 = por %p112, %p113
      %p115 = scmp.ne.s32.totalorder %s103, %s104
      %p116 = scmp.eq.s32.totalorder %s31, 1
      %p117 = por %p115, %p116
      %p119 = scmp.ne.s32.totalorder %s104, %s118
      %p120 = scmp.eq.s32.totalorder %s31, 0
      %p121 = por %p119, %p120
      %s123 = sadd.s32 %s122, 1
      %p126 = scmp.eq.s32.totalorder %s25, 1
      %p127 = scmp.ne.s32.totalorder %s122, %s124
      %p128 = scmp.eq.s32.totalorder %s25, 0
      %p129 = por %p127, %p128
      %p130 = scmp.ne.s32.totalorder %s122, %s124
      %p131 = scmp.eq.s32.totalorder %s30, 1
      %p132 = por %p130, %p131
      %p133 = scmp.ne.s32.totalorder %s124, %s125
      %p134 = scmp.eq.s32.totalorder %s30, 0
      %p135 = por %p133, %p134
      %p136 = scmp.ne.s32.totalorder %s124, %s125
      %p137 = scmp.eq.s32.totalorder %s31, 1
      %p138 = por %p136, %p137
      %p140 = scmp.ne.s32.totalorder %s125, %s139
      %p141 = scmp.eq.s32.totalorder %s31, 0
      %p142 = por %p140, %p141
      %s144 = sadd.s32 %s143, 1
      %p147 = scmp.eq.s32.totalorder %s25, 1
      %p148 = scmp.ne.s32.totalorder %s143, %s145
      %p149 = scmp.eq.s32.totalorder %s25, 0
      %p150 = por %p148, %p149
      %p151 = scmp.ne.s32.totalorder %s143, %s145
      %p152 = scmp.eq.s32.totalorder %s30, 1
      %p153 = por %p151, %p152
      %p154 = scmp.ne.s32.totalorder %s145, %s146
      %p155 = scmp.eq.s32.totalorder %s30, 0
      %p156 = por %p154, %p155
      %p157 = scmp.ne.s32.totalorder %s145, %s146
      %p158 = scmp.eq.s32.totalorder %s31, 1
      %p159 = por %p157, %p158
      %p161 = scmp.ne.s32.totalorder %s146, %s160
      %p162 = scmp.eq.s32.totalorder %s31, 0
      %p163 = por %p161, %p162
      %s165 = sadd.s32 %s164, 1
      %p168 = scmp.eq.s32.totalorder %s25, 1
      %p169 = scmp.ne.s32.totalorder %s164, %s166
      %p170 = scmp.eq.s32.totalorder %s25, 0
      %p171 = por %p169, %p170
      %p172 = scmp.ne.s32.totalorder %s164, %s166
      %p173 = scmp.eq.s32.totalorder %s30, 1
      %p174 = por %p172, %p173
      %p175 = scmp.ne.s32.totalorder %s166, %s167
      %p176 = scmp.eq.s32.totalorder %s30, 0
      %p177 = por %p175, %p176
      %p178 = scmp.ne.s32.totalorder %s166, %s167
      %p179 = scmp.eq.s32.totalorder %s31, 1
      %p180 = por %p178, %p179
      %p182 = scmp.ne.s32.totalorder %s167, %s181
      %p183 = scmp.eq.s32.totalorder %s31, 0
      %p184 = por %p182, %p183
      %s186 = sadd.s32 %s185, 1
      %p189 = scmp.eq.s32.totalorder %s25, 1
      %p190 = scmp.ne.s32.totalorder %s185, %s187
      %p191 = scmp.eq.s32.totalorder %s25, 0
      %p192 = por %p190, %p191
      %p193 = scmp.ne.s32.totalorder %s185, %s187
      %p194 = scmp.eq.s32.totalorder %s30, 1
      %p195 = por %p193, %p194
      %p196 = scmp.ne.s32.totalorder %s187, %s188
      %p197 = scmp.eq.s32.totalorder %s30, 0
      %p198 = por %p196, %p197
      %p199 = scmp.ne.s32.totalorder %s187, %s188
      %p200 = scmp.eq.s32.totalorder %s31, 1
      %p201 = por %p199, %p200
      %p203 = scmp.ne.s32.totalorder %s188, %s202
      %p204 = scmp.eq.s32.totalorder %s31, 0
      %p205 = por %p203, %p204
      %s207 = sadd.s32 %s206, 1
      %p210 = scmp.eq.s32.totalorder %s25, 1
      %p211 = scmp.ne.s32.totalorder %s206, %s208
      %p212 = scmp.eq.s32.totalorder %s25, 0
      %p213 = por %p211, %p212
      %p214 = scmp.ne.s32.totalorder %s206, %s208
      %p215 = scmp.eq.s32.totalorder %s30, 1
      %p216 = por %p214, %p215
      %p217 = scmp.ne.s32.totalorder %s208, %s209
      %p218 = scmp.eq.s32.totalorder %s30, 0
      %p219 = por %p217, %p218
      %p220 = scmp.ne.s32.totalorder %s208, %s209
      %p221 = scmp.eq.s32.totalorder %s31, 1
      %p222 = por %p220, %p221
      %p224 = scmp.ne.s32.totalorder %s209, %s223
      %p225 = scmp.eq.s32.totalorder %s31, 0
      %p226 = por %p224, %p225
      %s228 = sadd.s32 %s227, 1
      %p231 = scmp.eq.s32.totalorder %s25, 1
      %p232 = scmp.ne.s32.totalorder %s227, %s229
      %p233 = scmp.eq.s32.totalorder %s25, 0
      %p234 = por %p232, %p233
      %p235 = scmp.ne.s32.totalorder %s227, %s229
      %p236 = scmp.eq.s32.totalorder %s30, 1
      %p237 = por %p235, %p236
      %p238 = scmp.ne.s32.totalorder %s229, %s230
      %p239 = scmp.eq.s32.totalorder %s30, 0
      %p240 = por %p238, %p239
      %p241 = scmp.ne.s32.totalorder %s229, %s230
      %p242 = scmp.eq.s32.totalorder %s31, 1
      %p243 = por %p241, %p242
      %p245 = scmp.ne.s32.totalorder %s230, %s244
      %p246 = scmp.eq.s32.totalorder %s31, 0
      %p247 = por %p245, %p246
      %s248 = ssub.s32 %s25, %s32
      %p249 = scmp.eq.s32.totalorder %s248, 0
      %s251 = sadd.s32 %s250, 1
      %s252 = scalar_select %p249, %s250, %s251
      %p255 = pneg %p249
      %p256 = scmp.eq.s32.totalorder %s25, 1
      %p257 = por %p255, %p256
      %p258 = scmp.ne.s32.totalorder %s250, %s253
      %p259 = scmp.eq.s32.totalorder %s25, 0
      %p260 = por %p258, %p259
      %p261 = scmp.ne.s32.totalorder %s250, %s253
      %p262 = scmp.eq.s32.totalorder %s30, 1
      %p263 = por %p261, %p262
      %p264 = scmp.ne.s32.totalorder %s253, %s254
      %p265 = scmp.eq.s32.totalorder %s30, 0
      %p266 = por %p264, %p265
      %p267 = scmp.ne.s32.totalorder %s253, %s254
      %p268 = scmp.eq.s32.totalorder %s31, 1
      %p269 = por %p267, %p268
      %p271 = scmp.ne.s32.totalorder %s254, %s270
      %p272 = scmp.eq.s32.totalorder %s31, 0
      %p273 = por %p271, %p272
      %s274 = ssub.s32 %s25, %s32
      %p275 = scmp.eq.s32.totalorder %s274, 0
      %s277 = sadd.s32 %s276, 1
      %s278 = scalar_select %p275, %s276, %s277
      %p281 = pneg %p275
      %p282 = scmp.eq.s32.totalorder %s25, 1
      %p283 = por %p281, %p282
      %p284 = scmp.ne.s32.totalorder %s276, %s279
      %p285 = scmp.eq.s32.totalorder %s25, 0
      %p286 = por %p284, %p285
      %p287 = scmp.ne.s32.totalorder %s276, %s279
      %p288 = scmp.eq.s32.totalorder %s30, 1
      %p289 = por %p287, %p288
      %p290 = scmp.ne.s32.totalorder %s279, %s280
      %p291 = scmp.eq.s32.totalorder %s30, 0
      %p292 = por %p290, %p291
      %p293 = scmp.ne.s32.totalorder %s279, %s280
      %p294 = scmp.eq.s32.totalorder %s31, 1
      %p295 = por %p293, %p294
      %p297 = scmp.ne.s32.totalorder %s280, %s296
      %p298 = scmp.eq.s32.totalorder %s31, 0
      %p299 = por %p297, %p298
      %s300 = ssub.s32 %s25, %s32
      %p301 = scmp.eq.s32.totalorder %s300, 0
      %s303 = sadd.s32 %s302, 1
      %s304 = scalar_select %p301, %s302, %s303
      %p307 = pneg %p301
      %p308 = scmp.eq.s32.totalorder %s25, 1
      %p309 = por %p307, %p308
      %p310 = scmp.ne.s32.totalorder %s302, %s305
      %p311 = scmp.eq.s32.totalorder %s25, 0
      %p312 = por %p310, %p311
      %p313 = scmp.ne.s32.totalorder %s302, %s305
      %p314 = scmp.eq.s32.totalorder %s30, 1
      %p315 = por %p313, %p314
      %p316 = scmp.ne.s32.totalorder %s305, %s306
      %p317 = scmp.eq.s32.totalorder %s30, 0
      %p318 = por %p316, %p317
      %p319 = scmp.ne.s32.totalorder %s305, %s306
      %p320 = scmp.eq.s32.totalorder %s31, 1
      %p321 = por %p319, %p320
      %p323 = scmp.ne.s32.totalorder %s306, %s322
      %p324 = scmp.eq.s32.totalorder %s31, 0
      %p325 = por %p323, %p324
      %p326 = scmp.le.s32.totalorder 1, %s25
      %p327 = scmp.lt.s32.totalorder %s25, 3
      %p328 = pnand %p326, %p327
      %p329 = pneg %p328
      // Predicated region
      $region9: #{_lambda_.1} parent=5 // pred_check
        _
      $region10: #{_lambda_.1} parent=5 // pred_check_branch
        %331 = sbr.rel (%p328) target = $region12
      $region11: #{_lambda_.1} parent=5 // pred_region
        %s332 = ssub.s32 %s25, 1
        // Predicated region
        $region13: #{_lambda_.1} parent=11 // pred_check
          %p333 = pneg %p72
        $region14: #{_lambda_.1} parent=11 // pred_check_branch
          %335 = sbr.rel (%p333) target = $region16
        $region15: #{_lambda_.1} parent=11 // pred_region
          _
        $region16: #{_lambda_.1} parent=11 // pred_fallthru
          _
        // Predicated region
        $region17: #{_lambda_.1} parent=11 // pred_check
          %p336 = pneg %p93
        $region18: #{_lambda_.1} parent=11 // pred_check_branch
          %338 = sbr.rel (%p336) target = $region20
        $region19: #{_lambda_.1} parent=11 // pred_region
          _
        $region20: #{_lambda_.1} parent=11 // pred_fallthru
          _
        // Predicated region
        $region21: #{_lambda_.1} parent=11 // pred_check
          %p339 = pneg %p114
        $region22: #{_lambda_.1} parent=11 // pred_check_branch
          %341 = sbr.rel (%p339) target = $region24
        $region23: #{_lambda_.1} parent=11 // pred_region
          _
        $region24: #{_lambda_.1} parent=11 // pred_fallthru
          _
        // Predicated region
        $region25: #{_lambda_.1} parent=11 // pred_check
          %p342 = pneg %p135
        $region26: #{_lambda_.1} parent=11 // pred_check_branch
          %344 = sbr.rel (%p342) target = $region28
        $region27: #{_lambda_.1} parent=11 // pred_region
          _
        $region28: #{_lambda_.1} parent=11 // pred_fallthru
          _
        // Predicated region
        $region29: #{_lambda_.1} parent=11 // pred_check
          %p345 = pneg %p156
        $region30: #{_lambda_.1} parent=11 // pred_check_branch
          %347 = sbr.rel (%p345) target = $region32
        $region31: #{_lambda_.1} parent=11 // pred_region
          _
        $region32: #{_lambda_.1} parent=11 // pred_fallthru
          _
        // Predicated region
        $region33: #{_lambda_.1} parent=11 // pred_check
          %p348 = pneg %p177
        $region34: #{_lambda_.1} parent=11 // pred_check_branch
          %350 = sbr.rel (%p348) target = $region36
        $region35: #{_lambda_.1} parent=11 // pred_region
          _
        $region36: #{_lambda_.1} parent=11 // pred_fallthru
          _
        // Predicated region
        $region37: #{_lambda_.1} parent=11 // pred_check
          %p351 = pneg %p198
        $region38: #{_lambda_.1} parent=11 // pred_check_branch
          %353 = sbr.rel (%p351) target = $region40
        $region39: #{_lambda_.1} parent=11 // pred_region
          _
        $region40: #{_lambda_.1} parent=11 // pred_fallthru
          _
        // Predicated region
        $region41: #{_lambda_.1} parent=11 // pred_check
          %p354 = pneg %p219
        $region42: #{_lambda_.1} parent=11 // pred_check_branch
          %356 = sbr.rel (%p354) target = $region44
        $region43: #{_lambda_.1} parent=11 // pred_region
          _
        $region44: #{_lambda_.1} parent=11 // pred_fallthru
          _
        // Predicated region
        $region45: #{_lambda_.1} parent=11 // pred_check
          %p357 = pneg %p240
        $region46: #{_lambda_.1} parent=11 // pred_check_branch
          %359 = sbr.rel (%p357) target = $region48
        $region47: #{_lambda_.1} parent=11 // pred_region
          _
        $region48: #{_lambda_.1} parent=11 // pred_fallthru
          _
      $region12: #{_lambda_.1} parent=5 // pred_fallthru
        _
      %p360 = scmp.lt.s32.totalorder %s25, 2
      // Predicated region
      $region49: #{_lambda_.1} parent=5 // pred_check
        %p361 = pneg %p360
      $region50: #{_lambda_.1} parent=5 // pred_check_branch
        %363 = sbr.rel (%p361) target = $region52
      $region51: #{_lambda_.1} parent=5 // pred_region
        // Predicated region
        $region53: #{_lambda_.1} parent=51 // pred_check
          %p364 = pneg %p45
        $region54: #{_lambda_.1} parent=51 // pred_check_branch
          %366 = sbr.rel (%p364) target = $region56
        $region55: #{_lambda_.1} parent=51 // pred_region
          %p367 = scmp.lt.s32.totalorder %s25, 1
          %s368 = scalar_select %p367, %s25, 1
          %s369 = smul.addr %s368, 2
          %s370 = smul.addr %s369, 8
          %s371 = scalar_lea.vmem %s0, %s370
        $region56: #{_lambda_.1} parent=51 // pred_fallthru
          _
      $region52: #{_lambda_.1} parent=5 // pred_fallthru
        _
      %p372 = scmp.le.s32.totalorder 1, %s25
      %p373 = scmp.lt.s32.totalorder %s25, 3
      %p374 = pnand %p372, %p373
      %p375 = pneg %p374
      // Predicated region
      $region57: #{_lambda_.1} parent=5 // pred_check
        _
      $region58: #{_lambda_.1} parent=5 // pred_check_branch
        %377 = sbr.rel (%p374) target = $region60
      $region59: #{_lambda_.1} parent=5 // pred_region
        %s378 = ssub.s32 %s25, 1
        %p379 = scmp.lt.s32.totalorder %s30, 1
        %s380 = scalar_select %p379, %s30, 1
        %s381 = smul.addr %s380, 2
        %s382 = smul.addr %s381, 8
        %s383 = scalar_lea.vmem %s0, %s382
        %p384 = pneg %p51
        %p385 = pneg %p48
        %p386 = pneg %p72
        %p387 = pneg %p69
        %p388 = pneg %p93
        %p389 = pneg %p90
        %p390 = pneg %p114
        %p391 = pneg %p111
        %p392 = pneg %p135
        %p393 = pneg %p132
        %p394 = pneg %p156
        %p395 = pneg %p153
        %p396 = pneg %p177
        %p397 = pneg %p174
        %p398 = pneg %p198
        %p399 = pneg %p195
        %p400 = pneg %p219
        %p401 = pneg %p216
        %p402 = pneg %p240
        %p403 = pneg %p237
        %p404 = pneg %p266
        %p405 = pneg %p263
        %s406 = sand.u32 %s253, 1
        %s407 = scalar_lea.sflag [#allocation4], %s406
        %s408 = sand.u32 %s253, 1
        %s409 = smul.addr %s408, 16
        %s410 = scalar_lea.vmem [#allocation3], %s409
        %p411 = pneg %p292
        %p412 = pneg %p289
        %s413 = sand.u32 %s30, 1
        %s414 = scalar_lea.sflag [#allocation6], %s413
        %s415 = sand.u32 %s279, 1
        %s416 = smul.addr %s415, 4
        %s417 = scalar_lea.vmem [#allocation5], %s416
        %p418 = pneg %p318
        %p419 = pneg %p315
        %s420 = sand.u32 %s30, 1
        %s421 = scalar_lea.sflag [#allocation6], %s420
        %s422 = sand.u32 %s305, 1
        %s423 = smul.addr %s422, 64
        %s424 = scalar_lea.vmem [#allocation7], %s423
        %p425 = scmp.lt.s32.totalorder %s30, 1
        %s426 = scalar_select %p425, %s30, 1
        %s427 = smul.addr %s426, 2
        %s428 = smul.addr %s427, 8
        %s429 = scalar_lea.vmem %s0, %s428
        %v430 = vld [vmem:[%s429] sm:$0xff]
        %v431 = vld [vmem:[%s429 + $0x8] sm:$0xff]
        %v432 = vld [vmem:[%s1] sm:$0xff]
        %v433 = vld [vmem:[%s1 + $0x8] sm:$0xff]
        %v434 = vadd.f32 %v430, %v432
        %v435 = vadd.f32 %v431, %v433
        %v436 = vld [vmem:[%s2] sm:$0xff]
        %v437 = vld [vmem:[%s2 + $0x8] sm:$0xff]
        %v438 = vld [vmem:[%s2 + $0x10] sm:$0xff]
        %v439 = vld [vmem:[%s2 + $0x18] sm:$0xff]
        %vm440 = vcmask 261120
        %v442 = vsel %vm440, %v434, 0
        %v445 = vsel %vm440, %v435, 0
        %447 = vmatpush.msra.mxu0 0.0
        %448 = vmatpush.msra.mxu0 0.0
        %449 = vmatpush.msra.mxu0 0.0
        %450 = vmatpush.msra.mxu0 0.0
        %451 = vmatpush.msra.mxu0 0.0
        %452 = vmatpush.msra.mxu0 0.0
        %453 = vmatpush.msra.mxu0 0.0
        %454 = vmatpush.msra.mxu0 0.0
        %455 = vmatpush.msra.mxu0 0.0
        %456 = vmatpush.msra.mxu0 0.0
        %457 = vmatpush.msra.mxu0 0.0
        %458 = vmatpush.msra.mxu0 0.0
        %459 = vmatpush.msra.mxu0 %v439
        %460 = vmatpush.msra.mxu0 %v438
        %461 = vmatpush.msra.mxu0 %v437
        %462 = vmatpush.msra.mxu0 %v436
        %463 = vmatmul.f32.gmra.mxu0 %v442
        %v464 = vpop.f32.mrf.mxu0
        %v465 = vadd.f32 0.0, %v464
        %466 = vmatmul.f32.gmra.mxu0 %v445
        %v467 = vpop.f32.mrf.mxu0
        %v468 = vadd.f32 0.0, %v467
        %469 = vdwg.mxu0
        %v470 = vld [vmem:[%s3] sm:$0xff]
        %v471 = vld [vmem:[%s3 + $0x8] sm:$0xff]
        %v472 = vld [vmem:[%s3 + $0x10] sm:$0xff]
        %v473 = vld [vmem:[%s3 + $0x18] sm:$0xff]
        %vm476 = vcmask 1042432
        %v477 = vrot.slane %v465, 5
        %v478 = vrot.slane %v468, 5
        %v479 = vsel %vm476, %v477, %v478
        %v483 = vsel %vm476, 0.0, %v477
        %vm484 = vcmask 785408
        %485 = vst.msk [vmem:[#allocation2] sm:$0xff] %vm484, %v483
        %486 = vst.msk [vmem:[#allocation2 + $0x8] sm:$0xff] %vm484, %v479
        %vm487 = vcmask 780288
        %488 = vst.msk [vmem:[#allocation2 + $0x10] sm:$0x7] %vm487, %v478
        %v489 = vld [vmem:[#allocation2 + $0xf] sm:$0xf]
        %vm490 = vcmask 781312
        %491 = vst.msk [vmem:[%s417] sm:$0xf] %vm490, %v489
        %v492 = vld [vmem:[#allocation2] sm:$0xff]
        %v493 = vld [vmem:[#allocation2 + $0x8] sm:$0xff]
        %v494 = vld [vmem:[%s4] sm:$0x1]
        %v495 = vperm.slane %v494, 0
        %v496 = vmul.f32 %v492, %v495
        %v497 = vmul.f32 %v493, %v495
        %v498 = vadd.f32 %v496, 0.0
        %v499 = vadd.f32 %v497, 0.0
        %v500 = vld [vmem:[#allocation2 + $0x1] sm:$0xff]
        %v501 = vld [vmem:[#allocation2 + $0x9] sm:$0xff]
        %v502 = vld [vmem:[%s4 + $0x1] sm:$0x1]
        %v503 = vperm.slane %v502, 0
        %v504 = vmul.f32 %v500, %v503
        %v505 = vmul.f32 %v501, %v503
        %v506 = vadd.f32 %v498, %v504
        %v507 = vadd.f32 %v499, %v505
        %v508 = vld [vmem:[#allocation2 + $0x2] sm:$0xff]
        %v509 = vld [vmem:[#allocation2 + $0xa] sm:$0xff]
        %v510 = vld [vmem:[%s4 + $0x2] sm:$0x1]
        %v511 = vperm.slane %v510, 0
        %v512 = vmul.f32 %v508, %v511
        %v513 = vmul.f32 %v509, %v511
        %v514 = vadd.f32 %v506, %v512
        %v515 = vadd.f32 %v507, %v513
        %v516 = vld [vmem:[#allocation2 + $0x3] sm:$0xff]
        %v517 = vld [vmem:[#allocation2 + $0xb] sm:$0xff]
        %v518 = vld [vmem:[%s4 + $0x3] sm:$0x1]
        %v519 = vperm.slane %v518, 0
        %v520 = vmul.f32 %v516, %v519
        %v521 = vmul.f32 %v517, %v519
        %v522 = vadd.f32 %v514, %v520
        %v523 = vadd.f32 %v515, %v521
        %v524 = vld [vmem:[%s5] sm:$0x1]
        %v526 = vperm.slane %v524, 0
        %v528 = vadd.f32 %v522, %v526
        %v529 = vadd.f32 %v523, %v526
        %v530 = vsub.f32 0.0, %v528
        %v531 = vsub.f32 0.0, %v529
        %v532 = vmul.f32 %v530, 1.442695
        %v533 = vpow.pop %v532
        %v534 = vmul.f32 %v531, 1.442695
        %v535 = vpow.pop %v534
        %v536 = vadd.f32 %v533, 1.0
        %v537 = vadd.f32 %v535, 1.0
        %v538 = vrcp.pop %v536
        %v539 = vmul.f32 %v536, %v538
        %v540 = vsub.f32 1.0, %v539
        %v541 = vmul.f32 %v538, %v540
        %v542 = vadd.f32 %v538, %v541
        %vm543 = vweird.f32 %v536
        %vm544 = vweird.f32 %v538
        %vm545 = vmor %vm543, %vm544
        %v546 = vsel %vm545, %v538, %v542
        %v547 = vand.u32 2147483647, %v536
        %vm548 = vcmp.eq.f32.partialorder %v547, 8.507059e+37
        %v549 = vand.u32 %v536, 2147483648
        %v550 = vor.u32 1.1754944e-38, %v549
        %v551 = vsel %vm548, %v550, %v546
        %v552 = vmul.f32 1.0, %v551
        %v553 = vrcp.pop %v537
        %v554 = vmul.f32 %v537, %v553
        %v555 = vsub.f32 1.0, %v554
        %v556 = vmul.f32 %v553, %v555
        %v557 = vadd.f32 %v553, %v556
        %vm558 = vweird.f32 %v537
        %vm559 = vweird.f32 %v553
        %vm560 = vmor %vm558, %vm559
        %v561 = vsel %vm560, %v553, %v557
        %v562 = vand.u32 2147483647, %v537
        %vm563 = vcmp.eq.f32.partialorder %v562, 8.507059e+37
        %v564 = vand.u32 %v537, 2147483648
        %v565 = vor.u32 1.1754944e-38, %v564
        %v566 = vsel %vm563, %v565, %v561
        %v567 = vmul.f32 1.0, %v566
        %v568 = vmul.f32 %v528, %v552
        %v569 = vmul.f32 %v529, %v567
        %v570 = vld [vmem:[%s6] sm:$0x1]
        %v572 = vperm.slane %v570, 0
        %574 = vmatpush.msra.mxu0 0.0
        %575 = vmatpush.msra.mxu0 0.0
        %576 = vmatpush.msra.mxu0 0.0
        %577 = vmatpush.msra.mxu0 0.0
        %578 = vmatpush.msra.mxu0 0.0
        %579 = vmatpush.msra.mxu0 0.0
        %580 = vmatpush.msra.mxu0 0.0
        %581 = vmatpush.msra.mxu0 0.0
        %582 = vmatpush.msra.mxu0 0.0
        %583 = vmatpush.msra.mxu0 0.0
        %584 = vmatpush.msra.mxu0 0.0
        %585 = vmatpush.msra.mxu0 0.0
        %586 = vmatpush.msra.mxu0 %v473
        %587 = vmatpush.msra.mxu0 %v472
        %588 = vmatpush.msra.mxu0 %v471
        %589 = vmatpush.msra.mxu0 %v470
        %590 = vmatmul.f32.gmra.mxu0 %v442
        %v591 = vpop.f32.mrf.mxu0
        %v592 = vadd.f32 %v572, %v591
        %593 = vmatmul.f32.gmra.mxu0 %v445
        %v594 = vpop.f32.mrf.mxu0
        %v595 = vadd.f32 %v572, %v594
        %596 = vdwg.mxu0
        %vm597 = vcmp.gt.f32.partialorder %v592, 20.0
        %vm598 = vcmp.gt.f32.partialorder %v595, 20.0
        %v599 = vmul.f32 %v592, 1.442695
        %v600 = vpow.pop %v599
        %v601 = vmul.f32 %v595, 1.442695
        %v602 = vpow.pop %v601
        %v603 = vadd.f32 %v600, 1.0
        %v604 = vadd.f32 %v602, 1.0
        %v605 = vlog2.pop %v603
        %v606 = vmul.f32 %v605, 0.6931472
        %v607 = vlog2.pop %v604
        %v608 = vmul.f32 %v607, 0.6931472
        %v609 = vsel %vm597, %v592, %v606
        %v610 = vsel %vm598, %v595, %v608
        %v611 = vld [vmem:[%s7] sm:$0x1]
        %v612 = vmul.f32 %v611, 1.442695
        %v613 = vpow.pop %v612
        %v614 = vsub.f32 0.0, %v613
        %v616 = vperm.slane %v614, 0
        %v618 = vmul.f32 %v609, %v616
        %v619 = vmul.f32 %v610, %v616
        %v620 = vlaneseq
        %v621 = vshrl.u32 %v620, 7
        %v622 = vlaneseq
        %v623 = vand.u32 %v622, 127
        %vm624 = vcmp.ge.s32.totalorder %v621, %v623
        %v625 = vsel %vm624, 1, 0
        %v626 = vcvt.s32.f32 %v625
        %vm627 = vcmp.gt.s32.totalorder %v621, %v623
        %v628 = vsel %vm627, 1, 0
        %v629 = vcvt.s32.f32 %v628
        loop: start=0, step=1, limit=2
        $region61: #{_lambda_.1} parent=59 // loop_pre_header
          _
        $region62: #{_lambda_.1} parent=59 // loop_header
          %s631 = sphi 0, %s635
          %p632 = scmp.ge.s32.totalorder %s631, 2
          %v636 = vphi %v568, %v1276
          %v637 = vphi %v569, %v1985
          %v638 = vphi 0.0, %v1527
          %v639 = vphi 0.0, %v1528
          %v640 = vphi 0.0, %v1675
          %v641 = vphi 0.0, %v1676
          %v642 = vphi 0.0, %v1822
          %v643 = vphi 0.0, %v1823
          %v644 = vphi 0.0, %v1969
          %v645 = vphi 0.0, %v1970
        $region63: #{_lambda_.1} parent=59 // loop_header_branch
          %634 = sbr.rel (%p632) target = $region67
        $region64: #{_lambda_.1} parent=59 // loop_body
          %vm646 = vcmask 64512
          %v648 = vsel %vm646, %v626, 0
          %650 = vmatpush.msra.mxu0 0.0
          %651 = vmatpush.msra.mxu0 0.0
          %652 = vmatpush.msra.mxu0 0.0
          %653 = vmatpush.msra.mxu0 0.0
          %654 = vmatpush.msra.mxu0 0.0
          %655 = vmatpush.msra.mxu0 0.0
          %656 = vmatpush.msra.mxu0 0.0
          %657 = vmatpush.msra.mxu0 0.0
          %658 = vmatpush.msra.mxu0 0.0
          %659 = vmatpush.msra.mxu0 0.0
          %660 = vmatpush.msra.mxu0 0.0
          %661 = vmatpush.msra.mxu0 0.0
          %662 = vmatpush.msra.mxu0 0.0
          %663 = vmatpush.msra.mxu0 0.0
          %664 = vmatpush.msra.mxu0 0.0
          %665 = vmatpush.msra.mxu0 %v618
          %666 = vmatmul.f32.gmra.mxu0 %v648
          %v667 = vpop.f32.mrf.mxu0
          %v668 = vadd.f32 0.0, %v667
          %669 = vdwg.mxu0
          %671 = vset.pattern.permute.xlu0 0
          %672 = vperm.xlu0 %671, %v618
          %v673 = vpop.permute.xlu0 %672
          %v675 = vmul.f32 %v673, %v629
          %676 = vset.pattern.permute.xlu0 1
          %677 = vperm.xlu0 %676, %v618
          %v678 = vpop.permute.xlu0 %677
          %v680 = vmul.f32 %v678, %v629
          %681 = vset.pattern.permute.xlu0 2
          %682 = vperm.xlu0 %681, %v618
          %v683 = vpop.permute.xlu0 %682
          %v685 = vmul.f32 %v683, %v629
          %686 = vset.pattern.permute.xlu0 3
          %687 = vperm.xlu0 %686, %v618
          %v688 = vpop.permute.xlu0 %687
          %v690 = vmul.f32 %v688, %v629
          %692 = vrot.lane.b32.xlu0 %v680, 8
          %v693 = vpop.permute.xlu0 %692
          %696 = vrot.lane.b32.xlu0 %v685, 16
          %v697 = vpop.permute.xlu0 %696
          %700 = vrot.lane.b32.xlu0 %v690, 24
          %v701 = vpop.permute.xlu0 %700
          %v703 = vsel %vm646, %v675, %v693
          %vm704 = vcmask 130048
          %v705 = vsel %vm704, %v703, %v697
          %vm706 = vcmask 195584
          %v707 = vsel %vm706, %v705, %v701
          %708 = vmatpush.msra.mxu0 0.0
          %709 = vmatpush.msra.mxu0 0.0
          %710 = vmatpush.msra.mxu0 0.0
          %711 = vmatpush.msra.mxu0 0.0
          %712 = vmatpush.msra.mxu0 0.0
          %713 = vmatpush.msra.mxu0 0.0
          %714 = vmatpush.msra.mxu0 0.0
          %715 = vmatpush.msra.mxu0 0.0
          %716 = vmatpush.msra.mxu0 0.0
          %717 = vmatpush.msra.mxu0 0.0
          %718 = vmatpush.msra.mxu0 0.0
          %719 = vmatpush.msra.mxu0 0.0
          %720 = vmatpush.msra.mxu0 0.0
          %721 = vmatpush.msra.mxu0 0.0
          %722 = vmatpush.msra.mxu0 0.0
          %723 = vmatpush.msra.mxu0 %v707
          %724 = vmatmul.f32.gmra.mxu0 %v648
          %v725 = vpop.f32.mrf.mxu0
          %v726 = vadd.f32 0.0, %v725
          %727 = vdwg.mxu0
          %729 = vrot.lane.b32.xlu0 %v568, 48
          %v730 = vpop.permute.xlu0 %729
          %731 = vrot.lane.b32.xlu0 %v568, 64
          %v732 = vpop.permute.xlu0 %731
          %v733 = vsel %vm704, %v730, 0
          %v735 = vsel %vm704, %v732, 0
          %737 = vmatpush.xpose.msra.mxu0 0.0
          %738 = vmatpush.xpose.msra.mxu0 0.0
          %739 = vmatpush.xpose.msra.mxu0 0.0
          %740 = vmatpush.xpose.msra.mxu0 0.0
          %741 = vmatpush.xpose.msra.mxu0 0.0
          %742 = vmatpush.xpose.msra.mxu0 0.0
          %743 = vmatpush.xpose.msra.mxu0 0.0
          %744 = vmatpush.xpose.msra.mxu0 0.0
          %745 = vmatpush.xpose.msra.mxu0 0.0
          %746 = vmatpush.xpose.msra.mxu0 0.0
          %747 = vmatpush.xpose.msra.mxu0 0.0
          %748 = vmatpush.xpose.msra.mxu0 0.0
          %749 = vmatpush.xpose.msra.mxu0 0.0
          %750 = vmatpush.xpose.msra.mxu0 0.0
          %751 = vmatpush.xpose.msra.mxu0 0.0
          %752 = vmatpush.xpose.msra.mxu0 %v735
          %753 = vmatmul.f32.gmra.mxu0 %v733
          %v754 = vpop.f32.mrf.mxu0
          %v755 = vadd.f32 0.0, %v754
          %756 = vdwg.mxu0
          %v757 = vmul.f32 %v726, 1.442695
          %v758 = vpow.pop %v757
          %v759 = vsel %vm624, %v758, 0.0
          %761 = vset.pattern.permute.xlu0 0
          %762 = vperm.xlu0 %761, %v609
          %v763 = vpop.permute.xlu0 %762
          %v765 = vmul.f32 %v636, %v763
          %v766 = vmul.f32 %v755, %v759
          %v768 = vsel %vm704, 0.0, 0
          %770 = vmatpush.xpose.msra.mxu0 0.0
          %771 = vmatpush.xpose.msra.mxu0 0.0
          %772 = vmatpush.xpose.msra.mxu0 0.0
          %773 = vmatpush.xpose.msra.mxu0 0.0
          %774 = vmatpush.xpose.msra.mxu0 0.0
          %775 = vmatpush.xpose.msra.mxu0 0.0
          %776 = vmatpush.xpose.msra.mxu0 0.0
          %777 = vmatpush.xpose.msra.mxu0 0.0
          %778 = vmatpush.xpose.msra.mxu0 0.0
          %779 = vmatpush.xpose.msra.mxu0 0.0
          %780 = vmatpush.xpose.msra.mxu0 0.0
          %781 = vmatpush.xpose.msra.mxu0 0.0
          %782 = vmatpush.xpose.msra.mxu0 0.0
          %783 = vmatpush.xpose.msra.mxu0 0.0
          %784 = vmatpush.xpose.msra.mxu0 %v768
          %785 = vmatpush.xpose.msra.mxu0 %v768
          %786 = vmatmul.f32.gmra.mxu0 %v733
          %v787 = vpop.f32.mrf.mxu0
          %v788 = vadd.f32 0.0, %v787
          %789 = vdwg.mxu0
          %v790 = vmul.f32 %v668, 1.442695
          %v791 = vpow.pop %v790
          %793 = vset.pattern.permute.xlu0 0
          %794 = vperm.xlu0 %793, %v791
          %v795 = vpop.permute.xlu0 %794
          %v797 = vmul.f32 %v788, %v795
          %v799 = vsel %vm646, %v766, 0
          %801 = vmatpush.msra.mxu0 0.0
          %802 = vmatpush.msra.mxu0 0.0
          %803 = vmatpush.msra.mxu0 0.0
          %804 = vmatpush.msra.mxu0 0.0
          %805 = vmatpush.msra.mxu0 0.0
          %806 = vmatpush.msra.mxu0 0.0
          %807 = vmatpush.msra.mxu0 0.0
          %808 = vmatpush.msra.mxu0 0.0
          %809 = vmatpush.msra.mxu0 0.0
          %810 = vmatpush.msra.mxu0 0.0
          %811 = vmatpush.msra.mxu0 0.0
          %812 = vmatpush.msra.mxu0 0.0
          %813 = vmatpush.msra.mxu0 0.0
          %814 = vmatpush.msra.mxu0 0.0
          %815 = vmatpush.msra.mxu0 0.0
          %816 = vmatpush.msra.mxu0 %v765
          %817 = vmatmul.f32.gmra.mxu0 %v799
          %v818 = vpop.f32.mrf.mxu0
          %v819 = vadd.f32 %v797, %v818
          %820 = vdwg.mxu0
          %v821 = vperm.slane %v668, 7
          %v822 = vsub.f32 %v821, %v668
          %v823 = vmul.f32 %v822, 1.442695
          %v824 = vpow.pop %v823
          %826 = vset.pattern.permute.xlu0 0
          %827 = vperm.xlu0 %826, %v824
          %v828 = vpop.permute.xlu0 %827
          %v830 = vmul.f32 %v765, %v828
          %831 = vxpose.xlu0.b32.start [1/16] %v830, 128
          %832 = vxpose.xlu0.b32.cont [2/16] 0.0, 128
          %833 = vxpose.xlu0.b32.cont [3/16] 0.0, 128
          %834 = vxpose.xlu0.b32.cont [4/16] 0.0, 128
          %835 = vxpose.xlu0.b32.cont [5/16] 0.0, 128
          %836 = vxpose.xlu0.b32.cont [6/16] 0.0, 128
          %837 = vxpose.xlu0.b32.cont [7/16] 0.0, 128
          %838 = vxpose.xlu0.b32.cont [8/16] 0.0, 128
          %839 = vxpose.xlu0.b32.cont [9/16] 0.0, 128
          %840 = vxpose.xlu0.b32.cont [10/16] 0.0, 128
          %841 = vxpose.xlu0.b32.cont [11/16] 0.0, 128
          %842 = vxpose.xlu0.b32.cont [12/16] 0.0, 128
          %843 = vxpose.xlu0.b32.cont [13/16] 0.0, 128
          %844 = vxpose.xlu0.b32.cont [14/16] 0.0, 128
          %845 = vxpose.xlu0.b32.cont [15/16] 0.0, 128
          %846 = vxpose.xlu0.b32.end [16/16] 0.0, 128
          %v847 = vpop.trf.xlu0
          %v848 = vpop.trf.xlu0
          %v849 = vpop.trf.xlu0
          %v850 = vpop.trf.xlu0
          %v851 = vpop.trf.xlu0
          %v852 = vpop.trf.xlu0
          %v853 = vpop.trf.xlu0
          %v854 = vpop.trf.xlu0
          %v855 = vpop.trf.xlu0
          %v856 = vpop.trf.xlu0
          %v857 = vpop.trf.xlu0
          %v858 = vpop.trf.xlu0
          %v859 = vpop.trf.xlu0
          %v860 = vpop.trf.xlu0
          %v861 = vpop.trf.xlu0
          %v862 = vpop.trf.xlu0
          %v865 = vsel %vm646, %v847, 0
          %v868 = vsel %vm646, %v848, 0
          %870 = vmatpush.msra.mxu0 0.0
          %871 = vmatpush.msra.mxu0 0.0
          %872 = vmatpush.msra.mxu0 0.0
          %873 = vmatpush.msra.mxu0 0.0
          %874 = vmatpush.msra.mxu0 0.0
          %875 = vmatpush.msra.mxu0 0.0
          %876 = vmatpush.msra.mxu0 0.0
          %877 = vmatpush.msra.mxu0 0.0
          %878 = vmatpush.msra.mxu0 0.0
          %879 = vmatpush.msra.mxu0 0.0
          %880 = vmatpush.msra.mxu0 0.0
          %881 = vmatpush.msra.mxu0 0.0
          %882 = vmatpush.msra.mxu0 0.0
          %883 = vmatpush.msra.mxu0 0.0
          %884 = vmatpush.msra.mxu0 0.0
          %885 = vmatpush.msra.mxu0 %v732
          %886 = vmatmul.f32.gmra.mxu0 %v865
          %v887 = vpop.f32.mrf.mxu0
          %v888 = vadd.f32 0.0, %v887
          %889 = vmatmul.f32.gmra.mxu0 %v868
          %v890 = vpop.f32.mrf.mxu0
          %v891 = vadd.f32 0.0, %v890
          %892 = vdwg.mxu0
          %v893 = vrot.slane %v791, 7
          %s894 = vtos %v893
          %v895 = vstv %s894
          %v897 = vmul.f32 %v895, 0.0
          %v898 = vadd.f32 %v897, %v888
          %v899 = vadd.f32 %v897, %v891
          %901 = vrot.lane.b32.xlu0 %v758, 120
          %v902 = vpop.permute.xlu0 %901
          %v904 = vsel %vm624, %v902, 0.0
          %905 = vset.pattern.permute.xlu0 1
          %906 = vperm.xlu0 %905, %v609
          %v907 = vpop.permute.xlu0 %906
          %v909 = vmul.f32 %v636, %v907
          %v910 = vmul.f32 %v755, %v904
          %911 = vset.pattern.permute.xlu0 1
          %912 = vperm.xlu0 %911, %v791
          %v913 = vpop.permute.xlu0 %912
          %v915 = vmul.f32 %v788, %v913
          %917 = vrot.lane.b32.xlu0 %v909, 112
          %v918 = vpop.permute.xlu0 %917
          %v921 = vsel %vm646, %v910, 0
          %923 = vmatpush.msra.mxu0 0.0
          %924 = vmatpush.msra.mxu0 0.0
          %925 = vmatpush.msra.mxu0 0.0
          %926 = vmatpush.msra.mxu0 0.0
          %927 = vmatpush.msra.mxu0 0.0
          %928 = vmatpush.msra.mxu0 0.0
          %929 = vmatpush.msra.mxu0 0.0
          %930 = vmatpush.msra.mxu0 0.0
          %931 = vmatpush.msra.mxu0 0.0
          %932 = vmatpush.msra.mxu0 0.0
          %933 = vmatpush.msra.mxu0 0.0
          %934 = vmatpush.msra.mxu0 0.0
          %935 = vmatpush.msra.mxu0 0.0
          %936 = vmatpush.msra.mxu0 0.0
          %937 = vmatpush.msra.mxu0 0.0
          %938 = vmatpush.msra.mxu0 %v918
          %939 = vmatmul.f32.gmra.mxu0 %v921
          %v940 = vpop.f32.mrf.mxu0
          %v941 = vadd.f32 %v915, %v940
          %942 = vdwg.mxu0
          %943 = vset.pattern.permute.xlu0 1
          %944 = vperm.xlu0 %943, %v824
          %v945 = vpop.permute.xlu0 %944
          %v947 = vmul.f32 %v909, %v945
          %949 = vrot.lane.b32.xlu0 %v947, 112
          %v950 = vpop.permute.xlu0 %949
          %952 = vxpose.xlu0.b32.start [1/16] %v950, 128
          %953 = vxpose.xlu0.b32.cont [2/16] 0.0, 128
          %954 = vxpose.xlu0.b32.cont [3/16] 0.0, 128
          %955 = vxpose.xlu0.b32.cont [4/16] 0.0, 128
          %956 = vxpose.xlu0.b32.cont [5/16] 0.0, 128
          %957 = vxpose.xlu0.b32.cont [6/16] 0.0, 128
          %958 = vxpose.xlu0.b32.cont [7/16] 0.0, 128
          %959 = vxpose.xlu0.b32.cont [8/16] 0.0, 128
          %960 = vxpose.xlu0.b32.cont [9/16] 0.0, 128
          %961 = vxpose.xlu0.b32.cont [10/16] 0.0, 128
          %962 = vxpose.xlu0.b32.cont [11/16] 0.0, 128
          %963 = vxpose.xlu0.b32.cont [12/16] 0.0, 128
          %964 = vxpose.xlu0.b32.cont [13/16] 0.0, 128
          %965 = vxpose.xlu0.b32.cont [14/16] 0.0, 128
          %966 = vxpose.xlu0.b32.cont [15/16] 0.0, 128
          %967 = vxpose.xlu0.b32.end [16/16] 0.0, 128
          %v968 = vpop.trf.xlu0
          %v969 = vpop.trf.xlu0
          %v970 = vpop.trf.xlu0
          %v971 = vpop.trf.xlu0
          %v972 = vpop.trf.xlu0
          %v973 = vpop.trf.xlu0
          %v974 = vpop.trf.xlu0
          %v975 = vpop.trf.xlu0
          %v976 = vpop.trf.xlu0
          %v977 = vpop.trf.xlu0
          %v978 = vpop.trf.xlu0
          %v979 = vpop.trf.xlu0
          %v980 = vpop.trf.xlu0
          %v981 = vpop.trf.xlu0
          %v982 = vpop.trf.xlu0
          %v983 = vpop.trf.xlu0
          %v985 = vsel %vm646, %v968, 0
          %v988 = vsel %vm646, %v969, 0
          %990 = vmatpush.msra.mxu0 0.0
          %991 = vmatpush.msra.mxu0 0.0
          %992 = vmatpush.msra.mxu0 0.0
          %993 = vmatpush.msra.mxu0 0.0
          %994 = vmatpush.msra.mxu0 0.0
          %995 = vmatpush.msra.mxu0 0.0
          %996 = vmatpush.msra.mxu0 0.0
          %997 = vmatpush.msra.mxu0 0.0
          %998 = vmatpush.msra.mxu0 0.0
          %999 = vmatpush.msra.mxu0 0.0
          %1000 = vmatpush.msra.mxu0 0.0
          %1001 = vmatpush.msra.mxu0 0.0
          %1002 = vmatpush.msra.mxu0 0.0
          %1003 = vmatpush.msra.mxu0 0.0
          %1004 = vmatpush.msra.mxu0 0.0
          %1005 = vmatpush.msra.mxu0 %v732
          %1006 = vmatmul.f32.gmra.mxu0 %v985
          %v1007 = vpop.f32.mrf.mxu0
          %v1008 = vadd.f32 0.0, %v1007
          %1009 = vmatmul.f32.gmra.mxu0 %v988
          %v1010 = vpop.f32.mrf.mxu0
          %v1011 = vadd.f32 0.0, %v1010
          %1012 = vdwg.mxu0
          %1013 = vrot.lane.b32.xlu0 %v893, 127
          %v1014 = vpop.permute.xlu0 %1013
          %s1015 = vtos %v1014
          %v1016 = vstv %s1015
          %v1018 = vmul.f32 %v1016, 0.0
          %v1019 = vadd.f32 %v1018, %v1008
          %v1020 = vadd.f32 %v1018, %v1011
          %1021 = vrot.lane.b32.xlu0 %v758, 112
          %v1022 = vpop.permute.xlu0 %1021
          %v1024 = vsel %vm624, %v1022, 0.0
          %1025 = vset.pattern.permute.xlu0 2
          %1026 = vperm.xlu0 %1025, %v609
          %v1027 = vpop.permute.xlu0 %1026
          %v1029 = vmul.f32 %v636, %v1027
          %v1030 = vmul.f32 %v755, %v1024
          %1031 = vset.pattern.permute.xlu0 2
          %1032 = vperm.xlu0 %1031, %v791
          %v1033 = vpop.permute.xlu0 %1032
          %v1035 = vmul.f32 %v788, %v1033
          %1037 = vrot.lane.b32.xlu0 %v1029, 96
          %v1038 = vpop.permute.xlu0 %1037
          %v1041 = vsel %vm646, %v1030, 0
          %1043 = vmatpush.msra.mxu0 0.0
          %1044 = vmatpush.msra.mxu0 0.0
          %1045 = vmatpush.msra.mxu0 0.0
          %1046 = vmatpush.msra.mxu0 0.0
          %1047 = vmatpush.msra.mxu0 0.0
          %1048 = vmatpush.msra.mxu0 0.0
          %1049 = vmatpush.msra.mxu0 0.0
          %1050 = vmatpush.msra.mxu0 0.0
          %1051 = vmatpush.msra.mxu0 0.0
          %1052 = vmatpush.msra.mxu0 0.0
          %1053 = vmatpush.msra.mxu0 0.0
          %1054 = vmatpush.msra.mxu0 0.0
          %1055 = vmatpush.msra.mxu0 0.0
          %1056 = vmatpush.msra.mxu0 0.0
          %1057 = vmatpush.msra.mxu0 0.0
          %1058 = vmatpush.msra.mxu0 %v1038
          %1059 = vmatmul.f32.gmra.mxu0 %v1041
          %v1060 = vpop.f32.mrf.mxu0
          %v1061 = vadd.f32 %v1035, %v1060
          %1062 = vdwg.mxu0
          %1063 = vset.pattern.permute.xlu0 2
          %1064 = vperm.xlu0 %1063, %v824
          %v1065 = vpop.permute.xlu0 %1064
          %v1067 = vmul.f32 %v1029, %v1065
          %1069 = vrot.lane.b32.xlu0 %v1067, 96
          %v1070 = vpop.permute.xlu0 %1069
          %1072 = vxpose.xlu0.b32.start [1/16] %v1070, 128
          %1073 = vxpose.xlu0.b32.cont [2/16] 0.0, 128
          %1074 = vxpose.xlu0.b32.cont [3/16] 0.0, 128
          %1075 = vxpose.xlu0.b32.cont [4/16] 0.0, 128
          %1076 = vxpose.xlu0.b32.cont [5/16] 0.0, 128
          %1077 = vxpose.xlu0.b32.cont [6/16] 0.0, 128
          %1078 = vxpose.xlu0.b32.cont [7/16] 0.0, 128
          %1079 = vxpose.xlu0.b32.cont [8/16] 0.0, 128
          %1080 = vxpose.xlu0.b32.cont [9/16] 0.0, 128
          %1081 = vxpose.xlu0.b32.cont [10/16] 0.0, 128
          %1082 = vxpose.xlu0.b32.cont [11/16] 0.0, 128
          %1083 = vxpose.xlu0.b32.cont [12/16] 0.0, 128
          %1084 = vxpose.xlu0.b32.cont [13/16] 0.0, 128
          %1085 = vxpose.xlu0.b32.cont [14/16] 0.0, 128
          %1086 = vxpose.xlu0.b32.cont [15/16] 0.0, 128
          %1087 = vxpose.xlu0.b32.end [16/16] 0.0, 128
          %v1088 = vpop.trf.xlu0
          %v1089 = vpop.trf.xlu0
          %v1090 = vpop.trf.xlu0
          %v1091 = vpop.trf.xlu0
          %v1092 = vpop.trf.xlu0
          %v1093 = vpop.trf.xlu0
          %v1094 = vpop.trf.xlu0
          %v1095 = vpop.trf.xlu0
          %v1096 = vpop.trf.xlu0
          %v1097 = vpop.trf.xlu0
          %v1098 = vpop.trf.xlu0
          %v1099 = vpop.trf.xlu0
          %v1100 = vpop.trf.xlu0
          %v1101 = vpop.trf.xlu0
          %v1102 = vpop.trf.xlu0
          %v1103 = vpop.trf.xlu0
          %v1105 = vsel %vm646, %v1088, 0
          %v1108 = vsel %vm646, %v1089, 0
          %1110 = vmatpush.msra.mxu0 0.0
          %1111 = vmatpush.msra.mxu0 0.0
          %1112 = vmatpush.msra.mxu0 0.0
          %1113 = vmatpush.msra.mxu0 0.0
          %1114 = vmatpush.msra.mxu0 0.0
          %1115 = vmatpush.msra.mxu0 0.0
          %1116 = vmatpush.msra.mxu0 0.0
          %1117 = vmatpush.msra.mxu0 0.0
          %1118 = vmatpush.msra.mxu0 0.0
          %1119 = vmatpush.msra.mxu0 0.0
          %1120 = vmatpush.msra.mxu0 0.0
          %1121 = vmatpush.msra.mxu0 0.0
          %1122 = vmatpush.msra.mxu0 0.0
          %1123 = vmatpush.msra.mxu0 0.0
          %1124 = vmatpush.msra.mxu0 0.0
          %1125 = vmatpush.msra.mxu0 %v732
          %1126 = vmatmul.f32.gmra.mxu0 %v1105
          %v1127 = vpop.f32.mrf.mxu0
          %v1128 = vadd.f32 0.0, %v1127
          %1129 = vmatmul.f32.gmra.mxu0 %v1108
          %v1130 = vpop.f32.mrf.mxu0
          %v1131 = vadd.f32 0.0, %v1130
          %1132 = vdwg.mxu0
          %1133 = vrot.lane.b32.xlu0 %v893, 126
          %v1134 = vpop.permute.xlu0 %1133
          %s1135 = vtos %v1134
          %v1136 = vstv %s1135
          %v1138 = vmul.f32 %v1136, 0.0
          %v1139 = vadd.f32 %v1138, %v1128
          %v1140 = vadd.f32 %v1138, %v1131
          %1141 = vrot.lane.b32.xlu0 %v758, 104
          %v1142 = vpop.permute.xlu0 %1141
          %v1144 = vsel %vm624, %v1142, 0.0
          %1145 = vset.pattern.permute.xlu0 3
          %1146 = vperm.xlu0 %1145, %v609
          %v1147 = vpop.permute.xlu0 %1146
          %v1149 = vmul.f32 %v636, %v1147
          %v1150 = vmul.f32 %v755, %v1144
          %1151 = vset.pattern.permute.xlu0 3
          %1152 = vperm.xlu0 %1151, %v791
          %v1153 = vpop.permute.xlu0 %1152
          %v1155 = vmul.f32 %v788, %v1153
          %1157 = vrot.lane.b32.xlu0 %v1149, 80
          %v1158 = vpop.permute.xlu0 %1157
          %v1161 = vsel %vm646, %v1150, 0
          %1163 = vmatpush.msra.mxu0 0.0
          %1164 = vmatpush.msra.mxu0 0.0
          %1165 = vmatpush.msra.mxu0 0.0
          %1166 = vmatpush.msra.mxu0 0.0
          %1167 = vmatpush.msra.mxu0 0.0
          %1168 = vmatpush.msra.mxu0 0.0
          %1169 = vmatpush.msra.mxu0 0.0
          %1170 = vmatpush.msra.mxu0 0.0
          %1171 = vmatpush.msra.mxu0 0.0
          %1172 = vmatpush.msra.mxu0 0.0
          %1173 = vmatpush.msra.mxu0 0.0
          %1174 = vmatpush.msra.mxu0 0.0
          %1175 = vmatpush.msra.mxu0 0.0
          %1176 = vmatpush.msra.mxu0 0.0
          %1177 = vmatpush.msra.mxu0 0.0
          %1178 = vmatpush.msra.mxu0 %v1158
          %1179 = vmatmul.f32.gmra.mxu0 %v1161
          %v1180 = vpop.f32.mrf.mxu0
          %v1181 = vadd.f32 %v1155, %v1180
          %1182 = vdwg.mxu0
          %1183 = vset.pattern.permute.xlu0 3
          %1184 = vperm.xlu0 %1183, %v824
          %v1185 = vpop.permute.xlu0 %1184
          %v1187 = vmul.f32 %v1149, %v1185
          %1189 = vrot.lane.b32.xlu0 %v1187, 80
          %v1190 = vpop.permute.xlu0 %1189
          %1192 = vxpose.xlu0.b32.start [1/16] %v1190, 128
          %1193 = vxpose.xlu0.b32.cont [2/16] 0.0, 128
          %1194 = vxpose.xlu0.b32.cont [3/16] 0.0, 128
          %1195 = vxpose.xlu0.b32.cont [4/16] 0.0, 128
          %1196 = vxpose.xlu0.b32.cont [5/16] 0.0, 128
          %1197 = vxpose.xlu0.b32.cont [6/16] 0.0, 128
          %1198 = vxpose.xlu0.b32.cont [7/16] 0.0, 128
          %1199 = vxpose.xlu0.b32.cont [8/16] 0.0, 128
          %1200 = vxpose.xlu0.b32.cont [9/16] 0.0, 128
          %1201 = vxpose.xlu0.b32.cont [10/16] 0.0, 128
          %1202 = vxpose.xlu0.b32.cont [11/16] 0.0, 128
          %1203 = vxpose.xlu0.b32.cont [12/16] 0.0, 128
          %1204 = vxpose.xlu0.b32.cont [13/16] 0.0, 128
          %1205 = vxpose.xlu0.b32.cont [14/16] 0.0, 128
          %1206 = vxpose.xlu0.b32.cont [15/16] 0.0, 128
          %1207 = vxpose.xlu0.b32.end [16/16] 0.0, 128
          %v1208 = vpop.trf.xlu0
          %v1209 = vpop.trf.xlu0
          %v1210 = vpop.trf.xlu0
          %v1211 = vpop.trf.xlu0
          %v1212 = vpop.trf.xlu0
          %v1213 = vpop.trf.xlu0
          %v1214 = vpop.trf.xlu0
          %v1215 = vpop.trf.xlu0
          %v1216 = vpop.trf.xlu0
          %v1217 = vpop.trf.xlu0
          %v1218 = vpop.trf.xlu0
          %v1219 = vpop.trf.xlu0
          %v1220 = vpop.trf.xlu0
          %v1221 = vpop.trf.xlu0
          %v1222 = vpop.trf.xlu0
          %v1223 = vpop.trf.xlu0
          %v1225 = vsel %vm646, %v1208, 0
          %v1228 = vsel %vm646, %v1209, 0
          %1230 = vmatpush.msra.mxu0 0.0
          %1231 = vmatpush.msra.mxu0 0.0
          %1232 = vmatpush.msra.mxu0 0.0
          %1233 = vmatpush.msra.mxu0 0.0
          %1234 = vmatpush.msra.mxu0 0.0
          %1235 = vmatpush.msra.mxu0 0.0
          %1236 = vmatpush.msra.mxu0 0.0
          %1237 = vmatpush.msra.mxu0 0.0
          %1238 = vmatpush.msra.mxu0 0.0
          %1239 = vmatpush.msra.mxu0 0.0
          %1240 = vmatpush.msra.mxu0 0.0
          %1241 = vmatpush.msra.mxu0 0.0
          %1242 = vmatpush.msra.mxu0 0.0
          %1243 = vmatpush.msra.mxu0 0.0
          %1244 = vmatpush.msra.mxu0 0.0
          %1245 = vmatpush.msra.mxu0 %v732
          %1246 = vmatmul.f32.gmra.mxu0 %v1225
          %v1247 = vpop.f32.mrf.mxu0
          %v1248 = vadd.f32 0.0, %v1247
          %1249 = vmatmul.f32.gmra.mxu0 %v1228
          %v1250 = vpop.f32.mrf.mxu0
          %v1251 = vadd.f32 0.0, %v1250
          %1252 = vdwg.mxu0
          %1253 = vrot.lane.b32.xlu0 %v893, 125
          %v1254 = vpop.permute.xlu0 %1253
          %s1255 = vtos %v1254
          %v1256 = vstv %s1255
          %v1258 = vmul.f32 %v1256, 0.0
          %v1259 = vadd.f32 %v1258, %v1248
          %v1260 = vadd.f32 %v1258, %v1251
          %1262 = vrot.lane.b32.xlu0 %v941, 16
          %v1263 = vpop.permute.xlu0 %1262
          %1266 = vrot.lane.b32.xlu0 %v1061, 32
          %v1267 = vpop.permute.xlu0 %1266
          %1270 = vrot.lane.b32.xlu0 %v1181, 48
          %v1271 = vpop.permute.xlu0 %1270
          %v1273 = vsel %vm704, %v819, %v1263
          %v1274 = vsel %vm440, %v1273, %v1267
          %vm1275 = vcmask 392192
          %v1276 = vsel %vm1275, %v1274, %v1271
          %1277 = vmatpush.msra.mxu0 0.0
          %1278 = vmatpush.msra.mxu0 0.0
          %1279 = vmatpush.msra.mxu0 0.0
          %1280 = vmatpush.msra.mxu0 0.0
          %1281 = vmatpush.msra.mxu0 0.0
          %1282 = vmatpush.msra.mxu0 0.0
          %1283 = vmatpush.msra.mxu0 0.0
          %1284 = vmatpush.msra.mxu0 0.0
          %1285 = vmatpush.msra.mxu0 0.0
          %1286 = vmatpush.msra.mxu0 0.0
          %1287 = vmatpush.msra.mxu0 0.0
          %1288 = vmatpush.msra.mxu0 0.0
          %1289 = vmatpush.msra.mxu0 0.0
          %1290 = vmatpush.msra.mxu0 0.0
          %1291 = vmatpush.msra.mxu0 0.0
          %1292 = vmatpush.msra.mxu0 %v619
          %1293 = vmatmul.f32.gmra.mxu0 %v648
          %v1294 = vpop.f32.mrf.mxu0
          %v1295 = vadd.f32 0.0, %v1294
          %1296 = vdwg.mxu0
          %1298 = vset.pattern.permute.xlu0 0
          %1299 = vperm.xlu0 %1298, %v619
          %v1300 = vpop.permute.xlu0 %1299
          %v1302 = vmul.f32 %v1300, %v629
          %1303 = vset.pattern.permute.xlu0 1
          %1304 = vperm.xlu0 %1303, %v619
          %v1305 = vpop.permute.xlu0 %1304
          %v1307 = vmul.f32 %v1305, %v629
          %1308 = vset.pattern.permute.xlu0 2
          %1309 = vperm.xlu0 %1308, %v619
          %v1310 = vpop.permute.xlu0 %1309
          %v1312 = vmul.f32 %v1310, %v629
          %1313 = vset.pattern.permute.xlu0 3
          %1314 = vperm.xlu0 %1313, %v619
          %v1315 = vpop.permute.xlu0 %1314
          %v1317 = vmul.f32 %v1315, %v629
          %1319 = vrot.lane.b32.xlu0 %v1307, 8
          %v1320 = vpop.permute.xlu0 %1319
          %1323 = vrot.lane.b32.xlu0 %v1312, 16
          %v1324 = vpop.permute.xlu0 %1323
          %1327 = vrot.lane.b32.xlu0 %v1317, 24
          %v1328 = vpop.permute.xlu0 %1327
          %v1330 = vsel %vm646, %v1302, %v1320
          %v1331 = vsel %vm704, %v1330, %v1324
          %v1332 = vsel %vm706, %v1331, %v1328
          %1333 = vmatpush.msra.mxu0 0.0
          %1334 = vmatpush.msra.mxu0 0.0
          %1335 = vmatpush.msra.mxu0 0.0
          %1336 = vmatpush.msra.mxu0 0.0
          %1337 = vmatpush.msra.mxu0 0.0
          %1338 = vmatpush.msra.mxu0 0.0
          %1339 = vmatpush.msra.mxu0 0.0
          %1340 = vmatpush.msra.mxu0 0.0
          %1341 = vmatpush.msra.mxu0 0.0
          %1342 = vmatpush.msra.mxu0 0.0
          %1343 = vmatpush.msra.mxu0 0.0
          %1344 = vmatpush.msra.mxu0 0.0
          %1345 = vmatpush.msra.mxu0 0.0
          %1346 = vmatpush.msra.mxu0 0.0
          %1347 = vmatpush.msra.mxu0 0.0
          %1348 = vmatpush.msra.mxu0 %v1332
          %1349 = vmatmul.f32.gmra.mxu0 %v648
          %v1350 = vpop.f32.mrf.mxu0
          %v1351 = vadd.f32 0.0, %v1350
          %1352 = vdwg.mxu0
          %1354 = vrot.lane.b32.xlu0 %v569, 48
          %v1355 = vpop.permute.xlu0 %1354
          %1356 = vrot.lane.b32.xlu0 %v569, 64
          %v1357 = vpop.permute.xlu0 %1356
          %v1358 = vsel %vm704, %v1355, 0
          %v1360 = vsel %vm704, %v1357, 0
          %1362 = vmatpush.xpose.msra.mxu0 0.0
          %1363 = vmatpush.xpose.msra.mxu0 0.0
          %1364 = vmatpush.xpose.msra.mxu0 0.0
          %1365 = vmatpush.xpose.msra.mxu0 0.0
          %1366 = vmatpush.xpose.msra.mxu0 0.0
          %1367 = vmatpush.xpose.msra.mxu0 0.0
          %1368 = vmatpush.xpose.msra.mxu0 0.0
          %1369 = vmatpush.xpose.msra.mxu0 0.0
          %1370 = vmatpush.xpose.msra.mxu0 0.0
          %1371 = vmatpush.xpose.msra.mxu0 0.0
          %1372 = vmatpush.xpose.msra.mxu0 0.0
          %1373 = vmatpush.xpose.msra.mxu0 0.0
          %1374 = vmatpush.xpose.msra.mxu0 0.0
          %1375 = vmatpush.xpose.msra.mxu0 0.0
          %1376 = vmatpush.xpose.msra.mxu0 0.0
          %1377 = vmatpush.xpose.msra.mxu0 %v1360
          %1378 = vmatmul.f32.gmra.mxu0 %v1358
          %v1379 = vpop.f32.mrf.mxu0
          %v1380 = vadd.f32 0.0, %v1379
          %1381 = vdwg.mxu0
          %v1382 = vmul.f32 %v1351, 1.442695
          %v1383 = vpow.pop %v1382
          %v1384 = vsel %vm624, %v1383, 0.0
          %1386 = vset.pattern.permute.xlu0 0
          %1387 = vperm.xlu0 %1386, %v610
          %v1388 = vpop.permute.xlu0 %1387
          %v1390 = vmul.f32 %v637, %v1388
          %v1391 = vmul.f32 %v1380, %v1384
          %v1393 = vsel %vm704, %v898, 0
          %v1396 = vsel %vm704, %v899, 0
          %1398 = vmatpush.xpose.msra.mxu0 0.0
          %1399 = vmatpush.xpose.msra.mxu0 0.0
          %1400 = vmatpush.xpose.msra.mxu0 0.0
          %1401 = vmatpush.xpose.msra.mxu0 0.0
          %1402 = vmatpush.xpose.msra.mxu0 0.0
          %1403 = vmatpush.xpose.msra.mxu0 0.0
          %1404 = vmatpush.xpose.msra.mxu0 0.0
          %1405 = vmatpush.xpose.msra.mxu0 0.0
          %1406 = vmatpush.xpose.msra.mxu0 0.0
          %1407 = vmatpush.xpose.msra.mxu0 0.0
          %1408 = vmatpush.xpose.msra.mxu0 0.0
          %1409 = vmatpush.xpose.msra.mxu0 0.0
          %1410 = vmatpush.xpose.msra.mxu0 0.0
          %1411 = vmatpush.xpose.msra.mxu0 0.0
          %1412 = vmatpush.xpose.msra.mxu0 %v1396
          %1413 = vmatpush.xpose.msra.mxu0 %v1393
          %1414 = vmatmul.f32.gmra.mxu0 %v1358
          %v1415 = vpop.f32.mrf.mxu0
          %v1416 = vadd.f32 0.0, %v1415
          %1417 = vdwg.mxu0
          %v1418 = vmul.f32 %v1295, 1.442695
          %v1419 = vpow.pop %v1418
          %1421 = vset.pattern.permute.xlu0 0
          %1422 = vperm.xlu0 %1421, %v1419
          %v1423 = vpop.permute.xlu0 %1422
          %v1425 = vmul.f32 %v1416, %v1423
          %v1427 = vsel %vm646, %v1391, 0
          %1429 = vmatpush.msra.mxu0 0.0
          %1430 = vmatpush.msra.mxu0 0.0
          %1431 = vmatpush.msra.mxu0 0.0
          %1432 = vmatpush.msra.mxu0 0.0
          %1433 = vmatpush.msra.mxu0 0.0
          %1434 = vmatpush.msra.mxu0 0.0
          %1435 = vmatpush.msra.mxu0 0.0
          %1436 = vmatpush.msra.mxu0 0.0
          %1437 = vmatpush.msra.mxu0 0.0
          %1438 = vmatpush.msra.mxu0 0.0
          %1439 = vmatpush.msra.mxu0 0.0
          %1440 = vmatpush.msra.mxu0 0.0
          %1441 = vmatpush.msra.mxu0 0.0
          %1442 = vmatpush.msra.mxu0 0.0
          %1443 = vmatpush.msra.mxu0 0.0
          %1444 = vmatpush.msra.mxu0 %v1390
          %1445 = vmatmul.f32.gmra.mxu0 %v1427
          %v1446 = vpop.f32.mrf.mxu0
          %v1447 = vadd.f32 %v1425, %v1446
          %1448 = vdwg.mxu0
          %v1449 = vperm.slane %v1295, 7
          %v1450 = vsub.f32 %v1449, %v1295
          %v1451 = vmul.f32 %v1450, 1.442695
          %v1452 = vpow.pop %v1451
          %1454 = vset.pattern.permute.xlu0 0
          %1455 = vperm.xlu0 %1454, %v1452
          %v1456 = vpop.permute.xlu0 %1455
          %v1458 = vmul.f32 %v1390, %v1456
          %1459 = vxpose.xlu0.b32.start [1/16] %v1458, 128
          %1460 = vxpose.xlu0.b32.cont [2/16] 0.0, 128
          %1461 = vxpose.xlu0.b32.cont [3/16] 0.0, 128
          %1462 = vxpose.xlu0.b32.cont [4/16] 0.0, 128
          %1463 = vxpose.xlu0.b32.cont [5/16] 0.0, 128
          %1464 = vxpose.xlu0.b32.cont [6/16] 0.0, 128
          %1465 = vxpose.xlu0.b32.cont [7/16] 0.0, 128
          %1466 = vxpose.xlu0.b32.cont [8/16] 0.0, 128
          %1467 = vxpose.xlu0.b32.cont [9/16] 0.0, 128
          %1468 = vxpose.xlu0.b32.cont [10/16] 0.0, 128
          %1469 = vxpose.xlu0.b32.cont [11/16] 0.0, 128
          %1470 = vxpose.xlu0.b32.cont [12/16] 0.0, 128
          %1471 = vxpose.xlu0.b32.cont [13/16] 0.0, 128
          %1472 = vxpose.xlu0.b32.cont [14/16] 0.0, 128
          %1473 = vxpose.xlu0.b32.cont [15/16] 0.0, 128
          %1474 = vxpose.xlu0.b32.end [16/16] 0.0, 128
          %v1475 = vpop.trf.xlu0
          %v1476 = vpop.trf.xlu0
          %v1477 = vpop.trf.xlu0
          %v1478 = vpop.trf.xlu0
          %v1479 = vpop.trf.xlu0
          %v1480 = vpop.trf.xlu0
          %v1481 = vpop.trf.xlu0
          %v1482 = vpop.trf.xlu0
          %v1483 = vpop.trf.xlu0
          %v1484 = vpop.trf.xlu0
          %v1485 = vpop.trf.xlu0
          %v1486 = vpop.trf.xlu0
          %v1487 = vpop.trf.xlu0
          %v1488 = vpop.trf.xlu0
          %v1489 = vpop.trf.xlu0
          %v1490 = vpop.trf.xlu0
          %v1493 = vsel %vm646, %v1475, 0
          %v1496 = vsel %vm646, %v1476, 0
          %1498 = vmatpush.msra.mxu0 0.0
          %1499 = vmatpush.msra.mxu0 0.0
          %1500 = vmatpush.msra.mxu0 0.0
          %1501 = vmatpush.msra.mxu0 0.0
          %1502 = vmatpush.msra.mxu0 0.0
          %1503 = vmatpush.msra.mxu0 0.0
          %1504 = vmatpush.msra.mxu0 0.0
          %1505 = vmatpush.msra.mxu0 0.0
          %1506 = vmatpush.msra.mxu0 0.0
          %1507 = vmatpush.msra.mxu0 0.0
          %1508 = vmatpush.msra.mxu0 0.0
          %1509 = vmatpush.msra.mxu0 0.0
          %1510 = vmatpush.msra.mxu0 0.0
          %1511 = vmatpush.msra.mxu0 0.0
          %1512 = vmatpush.msra.mxu0 0.0
          %1513 = vmatpush.msra.mxu0 %v1357
          %1514 = vmatmul.f32.gmra.mxu0 %v1493
          %v1515 = vpop.f32.mrf.mxu0
          %v1516 = vadd.f32 0.0, %v1515
          %1517 = vmatmul.f32.gmra.mxu0 %v1496
          %v1518 = vpop.f32.mrf.mxu0
          %v1519 = vadd.f32 0.0, %v1518
          %1520 = vdwg.mxu0
          %v1521 = vrot.slane %v1419, 7
          %s1522 = vtos %v1521
          %v1523 = vstv %s1522
          %v1525 = vmul.f32 %v1523, %v898
          %v1526 = vmul.f32 %v1523, %v899
          %v1527 = vadd.f32 %v1525, %v1516
          %v1528 = vadd.f32 %v1526, %v1519
          %1530 = vrot.lane.b32.xlu0 %v1383, 120
          %v1531 = vpop.permute.xlu0 %1530
          %v1533 = vsel %vm624, %v1531, 0.0
          %1534 = vset.pattern.permute.xlu0 1
          %1535 = vperm.xlu0 %1534, %v610
          %v1536 = vpop.permute.xlu0 %1535
          %v1538 = vmul.f32 %v637, %v1536
          %v1539 = vmul.f32 %v1380, %v1533
          %v1541 = vsel %vm704, %v1019, 0
          %v1544 = vsel %vm704, %v1020, 0
          %1546 = vmatpush.xpose.msra.mxu0 0.0
          %1547 = vmatpush.xpose.msra.mxu0 0.0
          %1548 = vmatpush.xpose.msra.mxu0 0.0
          %1549 = vmatpush.xpose.msra.mxu0 0.0
          %1550 = vmatpush.xpose.msra.mxu0 0.0
          %1551 = vmatpush.xpose.msra.mxu0 0.0
          %1552 = vmatpush.xpose.msra.mxu0 0.0
          %1553 = vmatpush.xpose.msra.mxu0 0.0
          %1554 = vmatpush.xpose.msra.mxu0 0.0
          %1555 = vmatpush.xpose.msra.mxu0 0.0
          %1556 = vmatpush.xpose.msra.mxu0 0.0
          %1557 = vmatpush.xpose.msra.mxu0 0.0
          %1558 = vmatpush.xpose.msra.mxu0 0.0
          %1559 = vmatpush.xpose.msra.mxu0 0.0
          %1560 = vmatpush.xpose.msra.mxu0 %v1544
          %1561 = vmatpush.xpose.msra.mxu0 %v1541
          %1562 = vmatmul.f32.gmra.mxu0 %v1358
          %v1563 = vpop.f32.mrf.mxu0
          %v1564 = vadd.f32 0.0, %v1563
          %1565 = vdwg.mxu0
          %1566 = vset.pattern.permute.xlu0 1
          %1567 = vperm.xlu0 %1566, %v1419
          %v1568 = vpop.permute.xlu0 %1567
          %v1570 = vmul.f32 %v1564, %v1568
          %1572 = vrot.lane.b32.xlu0 %v1538, 112
          %v1573 = vpop.permute.xlu0 %1572
          %v1576 = vsel %vm646, %v1539, 0
          %1578 = vmatpush.msra.mxu0 0.0
          %1579 = vmatpush.msra.mxu0 0.0
          %1580 = vmatpush.msra.mxu0 0.0
          %1581 = vmatpush.msra.mxu0 0.0
          %1582 = vmatpush.msra.mxu0 0.0
          %1583 = vmatpush.msra.mxu0 0.0
          %1584 = vmatpush.msra.mxu0 0.0
          %1585 = vmatpush.msra.mxu0 0.0
          %1586 = vmatpush.msra.mxu0 0.0
          %1587 = vmatpush.msra.mxu0 0.0
          %1588 = vmatpush.msra.mxu0 0.0
          %1589 = vmatpush.msra.mxu0 0.0
          %1590 = vmatpush.msra.mxu0 0.0
          %1591 = vmatpush.msra.mxu0 0.0
          %1592 = vmatpush.msra.mxu0 0.0
          %1593 = vmatpush.msra.mxu0 %v1573
          %1594 = vmatmul.f32.gmra.mxu0 %v1576
          %v1595 = vpop.f32.mrf.mxu0
          %v1596 = vadd.f32 %v1570, %v1595
          %1597 = vdwg.mxu0
          %1598 = vset.pattern.permute.xlu0 1
          %1599 = vperm.xlu0 %1598, %v1452
          %v1600 = vpop.permute.xlu0 %1599
          %v1602 = vmul.f32 %v1538, %v1600
          %1604 = vrot.lane.b32.xlu0 %v1602, 112
          %v1605 = vpop.permute.xlu0 %1604
          %1607 = vxpose.xlu0.b32.start [1/16] %v1605, 128
          %1608 = vxpose.xlu0.b32.cont [2/16] 0.0, 128
          %1609 = vxpose.xlu0.b32.cont [3/16] 0.0, 128
          %1610 = vxpose.xlu0.b32.cont [4/16] 0.0, 128
          %1611 = vxpose.xlu0.b32.cont [5/16] 0.0, 128
          %1612 = vxpose.xlu0.b32.cont [6/16] 0.0, 128
          %1613 = vxpose.xlu0.b32.cont [7/16] 0.0, 128
          %1614 = vxpose.xlu0.b32.cont [8/16] 0.0, 128
          %1615 = vxpose.xlu0.b32.cont [9/16] 0.0, 128
          %1616 = vxpose.xlu0.b32.cont [10/16] 0.0, 128
          %1617 = vxpose.xlu0.b32.cont [11/16] 0.0, 128
          %1618 = vxpose.xlu0.b32.cont [12/16] 0.0, 128
          %1619 = vxpose.xlu0.b32.cont [13/16] 0.0, 128
          %1620 = vxpose.xlu0.b32.cont [14/16] 0.0, 128
          %1621 = vxpose.xlu0.b32.cont [15/16] 0.0, 128
          %1622 = vxpose.xlu0.b32.end [16/16] 0.0, 128
          %v1623 = vpop.trf.xlu0
          %v1624 = vpop.trf.xlu0
          %v1625 = vpop.trf.xlu0
          %v1626 = vpop.trf.xlu0
          %v1627 = vpop.trf.xlu0
          %v1628 = vpop.trf.xlu0
          %v1629 = vpop.trf.xlu0
          %v1630 = vpop.trf.xlu0
          %v1631 = vpop.trf.xlu0
          %v1632 = vpop.trf.xlu0
          %v1633 = vpop.trf.xlu0
          %v1634 = vpop.trf.xlu0
          %v1635 = vpop.trf.xlu0
          %v1636 = vpop.trf.xlu0
          %v1637 = vpop.trf.xlu0
          %v1638 = vpop.trf.xlu0
          %v1640 = vsel %vm646, %v1623, 0
          %v1643 = vsel %vm646, %v1624, 0
          %1645 = vmatpush.msra.mxu0 0.0
          %1646 = vmatpush.msra.mxu0 0.0
          %1647 = vmatpush.msra.mxu0 0.0
          %1648 = vmatpush.msra.mxu0 0.0
          %1649 = vmatpush.msra.mxu0 0.0
          %1650 = vmatpush.msra.mxu0 0.0
          %1651 = vmatpush.msra.mxu0 0.0
          %1652 = vmatpush.msra.mxu0 0.0
          %1653 = vmatpush.msra.mxu0 0.0
          %1654 = vmatpush.msra.mxu0 0.0
          %1655 = vmatpush.msra.mxu0 0.0
          %1656 = vmatpush.msra.mxu0 0.0
          %1657 = vmatpush.msra.mxu0 0.0
          %1658 = vmatpush.msra.mxu0 0.0
          %1659 = vmatpush.msra.mxu0 0.0
          %1660 = vmatpush.msra.mxu0 %v1357
          %1661 = vmatmul.f32.gmra.mxu0 %v1640
          %v1662 = vpop.f32.mrf.mxu0
          %v1663 = vadd.f32 0.0, %v1662
          %1664 = vmatmul.f32.gmra.mxu0 %v1643
          %v1665 = vpop.f32.mrf.mxu0
          %v1666 = vadd.f32 0.0, %v1665
          %1667 = vdwg.mxu0
          %1668 = vrot.lane.b32.xlu0 %v1521, 127
          %v1669 = vpop.permute.xlu0 %1668
          %s1670 = vtos %v1669
          %v1671 = vstv %s1670
          %v1673 = vmul.f32 %v1671, %v1019
          %v1674 = vmul.f32 %v1671, %v1020
          %v1675 = vadd.f32 %v1673, %v1663
          %v1676 = vadd.f32 %v1674, %v1666
          %1677 = vrot.lane.b32.xlu0 %v1383, 112
          %v1678 = vpop.permute.xlu0 %1677
          %v1680 = vsel %vm624, %v1678, 0.0
          %1681 = vset.pattern.permute.xlu0 2
          %1682 = vperm.xlu0 %1681, %v610
          %v1683 = vpop.permute.xlu0 %1682
          %v1685 = vmul.f32 %v637, %v1683
          %v1686 = vmul.f32 %v1380, %v1680
          %v1688 = vsel %vm704, %v1139, 0
          %v1691 = vsel %vm704, %v1140, 0
          %1693 = vmatpush.xpose.msra.mxu0 0.0
          %1694 = vmatpush.xpose.msra.mxu0 0.0
          %1695 = vmatpush.xpose.msra.mxu0 0.0
          %1696 = vmatpush.xpose.msra.mxu0 0.0
          %1697 = vmatpush.xpose.msra.mxu0 0.0
          %1698 = vmatpush.xpose.msra.mxu0 0.0
          %1699 = vmatpush.xpose.msra.mxu0 0.0
          %1700 = vmatpush.xpose.msra.mxu0 0.0
          %1701 = vmatpush.xpose.msra.mxu0 0.0
          %1702 = vmatpush.xpose.msra.mxu0 0.0
          %1703 = vmatpush.xpose.msra.mxu0 0.0
          %1704 = vmatpush.xpose.msra.mxu0 0.0
          %1705 = vmatpush.xpose.msra.mxu0 0.0
          %1706 = vmatpush.xpose.msra.mxu0 0.0
          %1707 = vmatpush.xpose.msra.mxu0 %v1691
          %1708 = vmatpush.xpose.msra.mxu0 %v1688
          %1709 = vmatmul.f32.gmra.mxu0 %v1358
          %v1710 = vpop.f32.mrf.mxu0
          %v1711 = vadd.f32 0.0, %v1710
          %1712 = vdwg.mxu0
          %1713 = vset.pattern.permute.xlu0 2
          %1714 = vperm.xlu0 %1713, %v1419
          %v1715 = vpop.permute.xlu0 %1714
          %v1717 = vmul.f32 %v1711, %v1715
          %1719 = vrot.lane.b32.xlu0 %v1685, 96
          %v1720 = vpop.permute.xlu0 %1719
          %v1723 = vsel %vm646, %v1686, 0
          %1725 = vmatpush.msra.mxu0 0.0
          %1726 = vmatpush.msra.mxu0 0.0
          %1727 = vmatpush.msra.mxu0 0.0
          %1728 = vmatpush.msra.mxu0 0.0
          %1729 = vmatpush.msra.mxu0 0.0
          %1730 = vmatpush.msra.mxu0 0.0
          %1731 = vmatpush.msra.mxu0 0.0
          %1732 = vmatpush.msra.mxu0 0.0
          %1733 = vmatpush.msra.mxu0 0.0
          %1734 = vmatpush.msra.mxu0 0.0
          %1735 = vmatpush.msra.mxu0 0.0
          %1736 = vmatpush.msra.mxu0 0.0
          %1737 = vmatpush.msra.mxu0 0.0
          %1738 = vmatpush.msra.mxu0 0.0
          %1739 = vmatpush.msra.mxu0 0.0
          %1740 = vmatpush.msra.mxu0 %v1720
          %1741 = vmatmul.f32.gmra.mxu0 %v1723
          %v1742 = vpop.f32.mrf.mxu0
          %v1743 = vadd.f32 %v1717, %v1742
          %1744 = vdwg.mxu0
          %1745 = vset.pattern.permute.xlu0 2
          %1746 = vperm.xlu0 %1745, %v1452
          %v1747 = vpop.permute.xlu0 %1746
          %v1749 = vmul.f32 %v1685, %v1747
          %1751 = vrot.lane.b32.xlu0 %v1749, 96
          %v1752 = vpop.permute.xlu0 %1751
          %1754 = vxpose.xlu0.b32.start [1/16] %v1752, 128
          %1755 = vxpose.xlu0.b32.cont [2/16] 0.0, 128
          %1756 = vxpose.xlu0.b32.cont [3/16] 0.0, 128
          %1757 = vxpose.xlu0.b32.cont [4/16] 0.0, 128
          %1758 = vxpose.xlu0.b32.cont [5/16] 0.0, 128
          %1759 = vxpose.xlu0.b32.cont [6/16] 0.0, 128
          %1760 = vxpose.xlu0.b32.cont [7/16] 0.0, 128
          %1761 = vxpose.xlu0.b32.cont [8/16] 0.0, 128
          %1762 = vxpose.xlu0.b32.cont [9/16] 0.0, 128
          %1763 = vxpose.xlu0.b32.cont [10/16] 0.0, 128
          %1764 = vxpose.xlu0.b32.cont [11/16] 0.0, 128
          %1765 = vxpose.xlu0.b32.cont [12/16] 0.0, 128
          %1766 = vxpose.xlu0.b32.cont [13/16] 0.0, 128
          %1767 = vxpose.xlu0.b32.cont [14/16] 0.0, 128
          %1768 = vxpose.xlu0.b32.cont [15/16] 0.0, 128
          %1769 = vxpose.xlu0.b32.end [16/16] 0.0, 128
          %v1770 = vpop.trf.xlu0
          %v1771 = vpop.trf.xlu0
          %v1772 = vpop.trf.xlu0
          %v1773 = vpop.trf.xlu0
          %v1774 = vpop.trf.xlu0
          %v1775 = vpop.trf.xlu0
          %v1776 = vpop.trf.xlu0
          %v1777 = vpop.trf.xlu0
          %v1778 = vpop.trf.xlu0
          %v1779 = vpop.trf.xlu0
          %v1780 = vpop.trf.xlu0
          %v1781 = vpop.trf.xlu0
          %v1782 = vpop.trf.xlu0
          %v1783 = vpop.trf.xlu0
          %v1784 = vpop.trf.xlu0
          %v1785 = vpop.trf.xlu0
          %v1787 = vsel %vm646, %v1770, 0
          %v1790 = vsel %vm646, %v1771, 0
          %1792 = vmatpush.msra.mxu0 0.0
          %1793 = vmatpush.msra.mxu0 0.0
          %1794 = vmatpush.msra.mxu0 0.0
          %1795 = vmatpush.msra.mxu0 0.0
          %1796 = vmatpush.msra.mxu0 0.0
          %1797 = vmatpush.msra.mxu0 0.0
          %1798 = vmatpush.msra.mxu0 0.0
          %1799 = vmatpush.msra.mxu0 0.0
          %1800 = vmatpush.msra.mxu0 0.0
          %1801 = vmatpush.msra.mxu0 0.0
          %1802 = vmatpush.msra.mxu0 0.0
          %1803 = vmatpush.msra.mxu0 0.0
          %1804 = vmatpush.msra.mxu0 0.0
          %1805 = vmatpush.msra.mxu0 0.0
          %1806 = vmatpush.msra.mxu0 0.0
          %1807 = vmatpush.msra.mxu0 %v1357
          %1808 = vmatmul.f32.gmra.mxu0 %v1787
          %v1809 = vpop.f32.mrf.mxu0
          %v1810 = vadd.f32 0.0, %v1809
          %1811 = vmatmul.f32.gmra.mxu0 %v1790
          %v1812 = vpop.f32.mrf.mxu0
          %v1813 = vadd.f32 0.0, %v1812
          %1814 = vdwg.mxu0
          %1815 = vrot.lane.b32.xlu0 %v1521, 126
          %v1816 = vpop.permute.xlu0 %1815
          %s1817 = vtos %v1816
          %v1818 = vstv %s1817
          %v1820 = vmul.f32 %v1818, %v1139
          %v1821 = vmul.f32 %v1818, %v1140
          %v1822 = vadd.f32 %v1820, %v1810
          %v1823 = vadd.f32 %v1821, %v1813
          %1824 = vrot.lane.b32.xlu0 %v1383, 104
          %v1825 = vpop.permute.xlu0 %1824
          %v1827 = vsel %vm624, %v1825, 0.0
          %1828 = vset.pattern.permute.xlu0 3
          %1829 = vperm.xlu0 %1828, %v610
          %v1830 = vpop.permute.xlu0 %1829
          %v1832 = vmul.f32 %v637, %v1830
          %v1833 = vmul.f32 %v1380, %v1827
          %v1835 = vsel %vm704, %v1259, 0
          %v1838 = vsel %vm704, %v1260, 0
          %1840 = vmatpush.xpose.msra.mxu0 0.0
          %1841 = vmatpush.xpose.msra.mxu0 0.0
          %1842 = vmatpush.xpose.msra.mxu0 0.0
          %1843 = vmatpush.xpose.msra.mxu0 0.0
          %1844 = vmatpush.xpose.msra.mxu0 0.0
          %1845 = vmatpush.xpose.msra.mxu0 0.0
          %1846 = vmatpush.xpose.msra.mxu0 0.0
          %1847 = vmatpush.xpose.msra.mxu0 0.0
          %1848 = vmatpush.xpose.msra.mxu0 0.0
          %1849 = vmatpush.xpose.msra.mxu0 0.0
          %1850 = vmatpush.xpose.msra.mxu0 0.0
          %1851 = vmatpush.xpose.msra.mxu0 0.0
          %1852 = vmatpush.xpose.msra.mxu0 0.0
          %1853 = vmatpush.xpose.msra.mxu0 0.0
          %1854 = vmatpush.xpose.msra.mxu0 %v1838
          %1855 = vmatpush.xpose.msra.mxu0 %v1835
          %1856 = vmatmul.f32.gmra.mxu0 %v1358
          %v1857 = vpop.f32.mrf.mxu0
          %v1858 = vadd.f32 0.0, %v1857
          %1859 = vdwg.mxu0
          %1860 = vset.pattern.permute.xlu0 3
          %1861 = vperm.xlu0 %1860, %v1419
          %v1862 = vpop.permute.xlu0 %1861
          %v1864 = vmul.f32 %v1858, %v1862
          %1866 = vrot.lane.b32.xlu0 %v1832, 80
          %v1867 = vpop.permute.xlu0 %1866
          %v1870 = vsel %vm646, %v1833, 0
          %1872 = vmatpush.msra.mxu0 0.0
          %1873 = vmatpush.msra.mxu0 0.0
          %1874 = vmatpush.msra.mxu0 0.0
          %1875 = vmatpush.msra.mxu0 0.0
          %1876 = vmatpush.msra.mxu0 0.0
          %1877 = vmatpush.msra.mxu0 0.0
          %1878 = vmatpush.msra.mxu0 0.0
          %1879 = vmatpush.msra.mxu0 0.0
          %1880 = vmatpush.msra.mxu0 0.0
          %1881 = vmatpush.msra.mxu0 0.0
          %1882 = vmatpush.msra.mxu0 0.0
          %1883 = vmatpush.msra.mxu0 0.0
          %1884 = vmatpush.msra.mxu0 0.0
          %1885 = vmatpush.msra.mxu0 0.0
          %1886 = vmatpush.msra.mxu0 0.0
          %1887 = vmatpush.msra.mxu0 %v1867
          %1888 = vmatmul.f32.gmra.mxu0 %v1870
          %v1889 = vpop.f32.mrf.mxu0
          %v1890 = vadd.f32 %v1864, %v1889
          %1891 = vdwg.mxu0
          %1892 = vset.pattern.permute.xlu0 3
          %1893 = vperm.xlu0 %1892, %v1452
          %v1894 = vpop.permute.xlu0 %1893
          %v1896 = vmul.f32 %v1832, %v1894
          %1898 = vrot.lane.b32.xlu0 %v1896, 80
          %v1899 = vpop.permute.xlu0 %1898
          %1901 = vxpose.xlu0.b32.start [1/16] %v1899, 128
          %1902 = vxpose.xlu0.b32.cont [2/16] 0.0, 128
          %1903 = vxpose.xlu0.b32.cont [3/16] 0.0, 128
          %1904 = vxpose.xlu0.b32.cont [4/16] 0.0, 128
          %1905 = vxpose.xlu0.b32.cont [5/16] 0.0, 128
          %1906 = vxpose.xlu0.b32.cont [6/16] 0.0, 128
          %1907 = vxpose.xlu0.b32.cont [7/16] 0.0, 128
          %1908 = vxpose.xlu0.b32.cont [8/16] 0.0, 128
          %1909 = vxpose.xlu0.b32.cont [9/16] 0.0, 128
          %1910 = vxpose.xlu0.b32.cont [10/16] 0.0, 128
          %1911 = vxpose.xlu0.b32.cont [11/16] 0.0, 128
          %1912 = vxpose.xlu0.b32.cont [12/16] 0.0, 128
          %1913 = vxpose.xlu0.b32.cont [13/16] 0.0, 128
          %1914 = vxpose.xlu0.b32.cont [14/16] 0.0, 128
          %1915 = vxpose.xlu0.b32.cont [15/16] 0.0, 128
          %1916 = vxpose.xlu0.b32.end [16/16] 0.0, 128
          %v1917 = vpop.trf.xlu0
          %v1918 = vpop.trf.xlu0
          %v1919 = vpop.trf.xlu0
          %v1920 = vpop.trf.xlu0
          %v1921 = vpop.trf.xlu0
          %v1922 = vpop.trf.xlu0
          %v1923 = vpop.trf.xlu0
          %v1924 = vpop.trf.xlu0
          %v1925 = vpop.trf.xlu0
          %v1926 = vpop.trf.xlu0
          %v1927 = vpop.trf.xlu0
          %v1928 = vpop.trf.xlu0
          %v1929 = vpop.trf.xlu0
          %v1930 = vpop.trf.xlu0
          %v1931 = vpop.trf.xlu0
          %v1932 = vpop.trf.xlu0
          %v1934 = vsel %vm646, %v1917, 0
          %v1937 = vsel %vm646, %v1918, 0
          %1939 = vmatpush.msra.mxu0 0.0
          %1940 = vmatpush.msra.mxu0 0.0
          %1941 = vmatpush.msra.mxu0 0.0
          %1942 = vmatpush.msra.mxu0 0.0
          %1943 = vmatpush.msra.mxu0 0.0
          %1944 = vmatpush.msra.mxu0 0.0
          %1945 = vmatpush.msra.mxu0 0.0
          %1946 = vmatpush.msra.mxu0 0.0
          %1947 = vmatpush.msra.mxu0 0.0
          %1948 = vmatpush.msra.mxu0 0.0
          %1949 = vmatpush.msra.mxu0 0.0
          %1950 = vmatpush.msra.mxu0 0.0
          %1951 = vmatpush.msra.mxu0 0.0
          %1952 = vmatpush.msra.mxu0 0.0
          %1953 = vmatpush.msra.mxu0 0.0
          %1954 = vmatpush.msra.mxu0 %v1357
          %1955 = vmatmul.f32.gmra.mxu0 %v1934
          %v1956 = vpop.f32.mrf.mxu0
          %v1957 = vadd.f32 0.0, %v1956
          %1958 = vmatmul.f32.gmra.mxu0 %v1937
          %v1959 = vpop.f32.mrf.mxu0
          %v1960 = vadd.f32 0.0, %v1959
          %1961 = vdwg.mxu0
          %1962 = vrot.lane.b32.xlu0 %v1521, 125
          %v1963 = vpop.permute.xlu0 %1962
          %s1964 = vtos %v1963
          %v1965 = vstv %s1964
          %v1967 = vmul.f32 %v1965, %v1259
          %v1968 = vmul.f32 %v1965, %v1260
          %v1969 = vadd.f32 %v1967, %v1957
          %v1970 = vadd.f32 %v1968, %v1960
          %1972 = vrot.lane.b32.xlu0 %v1596, 16
          %v1973 = vpop.permute.xlu0 %1972
          %1976 = vrot.lane.b32.xlu0 %v1743, 32
          %v1977 = vpop.permute.xlu0 %1976
          %1980 = vrot.lane.b32.xlu0 %v1890, 48
          %v1981 = vpop.permute.xlu0 %1980
          %v1983 = vsel %vm704, %v1447, %v1973
          %v1984 = vsel %vm440, %v1983, %v1977
          %v1985 = vsel %vm1275, %v1984, %v1981
        $region65: #{_lambda_.1} parent=59 // loop_footer
          %s635 = sadd.s32 1, %s631
        $region66: #{_lambda_.1} parent=59 // loop_footer_branch
          %630 = sbr.rel target = $region62
        $region67: #{_lambda_.1} parent=59 // loop_exit
          _
        %v1986 = vld [vmem:[%s8] sm:$0x1]
        %v1988 = vperm.slane %v1986, 0
        %v1990 = vmul.f32 %v568, %v1988
        %v1991 = vmul.f32 %v569, %v1988
        %v1992 = vadd.f32 %v636, %v1990
        %v1993 = vadd.f32 %v637, %v1991
        %v1994 = vld [vmem:[%s9] sm:$0xff]
        %v1995 = vld [vmem:[%s9 + $0x8] sm:$0xff]
        %v1996 = vld [vmem:[%s9 + $0x10] sm:$0xff]
        %v1997 = vld [vmem:[%s9 + $0x18] sm:$0xff]
        %v1998 = vld [vmem:[%s9 + $0x20] sm:$0xff]
        %v1999 = vld [vmem:[%s9 + $0x28] sm:$0xff]
        %v2000 = vld [vmem:[%s9 + $0x30] sm:$0xff]
        %v2001 = vld [vmem:[%s9 + $0x38] sm:$0xff]
        %vm2002 = vcmask 523264
        %v2004 = vsel %vm2002, %v1992, 0
        %v2007 = vsel %vm2002, %v1993, 0
        %2009 = vmatpush.msra.mxu0 0.0
        %2010 = vmatpush.msra.mxu0 0.0
        %2011 = vmatpush.msra.mxu0 0.0
        %2012 = vmatpush.msra.mxu0 0.0
        %2013 = vmatpush.msra.mxu0 0.0
        %2014 = vmatpush.msra.mxu0 0.0
        %2015 = vmatpush.msra.mxu0 0.0
        %2016 = vmatpush.msra.mxu0 0.0
        %2017 = vmatpush.msra.mxu0 %v2001
        %2018 = vmatpush.msra.mxu0 %v2000
        %2019 = vmatpush.msra.mxu0 %v1999
        %2020 = vmatpush.msra.mxu0 %v1998
        %2021 = vmatpush.msra.mxu0 %v1997
        %2022 = vmatpush.msra.mxu0 %v1996
        %2023 = vmatpush.msra.mxu0 %v1995
        %2024 = vmatpush.msra.mxu0 %v1994
        %2025 = vmatmul.f32.gmra.mxu0 %v2004
        %v2026 = vpop.f32.mrf.mxu0
        %v2027 = vadd.f32 0.0, %v2026
        %2028 = vmatmul.f32.gmra.mxu0 %v2007
        %v2029 = vpop.f32.mrf.mxu0
        %v2030 = vadd.f32 0.0, %v2029
        %2031 = vdwg.mxu0
        %2032 = vst.msk [vmem:[%s410] sm:$0xff] %vm440, %v2027
        %2033 = vst.msk [vmem:[%s410 + $0x8] sm:$0xff] %vm440, %v2030
        %vm2034 = vcmask 130048
        %2035 = vst.msk [vmem:[%s424] sm:$0xff] %vm2034, %v638
        %2036 = vst.msk [vmem:[%s424 + $0x8] sm:$0xff] %vm2034, %v639
        %2037 = vst.msk [vmem:[%s424 + $0x10] sm:$0xff] %vm2034, %v640
        %2038 = vst.msk [vmem:[%s424 + $0x18] sm:$0xff] %vm2034, %v641
        %2039 = vst.msk [vmem:[%s424 + $0x20] sm:$0xff] %vm2034, %v642
        %2040 = vst.msk [vmem:[%s424 + $0x28] sm:$0xff] %vm2034, %v643
        %2041 = vst.msk [vmem:[%s424 + $0x30] sm:$0xff] %vm2034, %v644
        %2042 = vst.msk [vmem:[%s424 + $0x38] sm:$0xff] %vm2034, %v645
        %s2043 = sand.u32 %s253, 1
        %s2044 = scalar_lea.sflag [#allocation4], %s2043
        %s2045 = sand.u32 %s253, 1
        %s2046 = smul.addr %s2045, 16
        %s2047 = scalar_lea.vmem [#allocation3], %s2046
        %s2048 = sand.u32 %s30, 1
        %s2049 = scalar_lea.sflag [#allocation6], %s2048
        %s2050 = sand.u32 %s279, 1
        %s2051 = smul.addr %s2050, 4
        %s2052 = scalar_lea.vmem [#allocation5], %s2051
        %s2053 = sand.u32 %s30, 1
        %s2054 = scalar_lea.sflag [#allocation6], %s2053
        %s2055 = sand.u32 %s305, 1
        %s2056 = smul.addr %s2055, 64
        %s2057 = scalar_lea.vmem [#allocation7], %s2056
        // Predicated region
        $region68: #{_lambda_.1} parent=59 // pred_check
          %p2058 = pneg %p263
        $region69: #{_lambda_.1} parent=59 // pred_check_branch
          %2060 = sbr.rel (%p2058) target = $region71
        $region70: #{_lambda_.1} parent=59 // pred_region
          %2062 = vsyncadd %s2044, 0
          %s2063 = smul.addr %s30, 2
          %s2064 = smul.addr %s2063, 8
          %s2065 = scalar_lea.hbm %s10, %s2064
          %s2066 = sshll.u32 %s2047, 4
          %s2067 = int_to_ptr.vmem [resolvable:$true] %s2066
          %s2068 = sshll.u32 %s2065, 4
          %s2069 = int_to_ptr.hbm [resolvable:$true] %s2068
          %2074 = dma.vmem_to_hbm [thread:$0]  %s2067, 256, %s2069, %s2044, 128, 128, 8
        $region71: #{_lambda_.1} parent=59 // pred_fallthru
          _
        // Predicated region
        $region72: #{_lambda_.1} parent=59 // pred_check
          %p2075 = pneg %p289
        $region73: #{_lambda_.1} parent=59 // pred_check_branch
          %2077 = sbr.rel (%p2075) target = $region75
        $region74: #{_lambda_.1} parent=59 // pred_region
          %2079 = vsyncadd %s2049, 0
          %s2080 = smul.addr %s30, 4
          %s2081 = scalar_lea.hbm %s11, %s2080
          %s2083 = sshll.u32 %s2052, 4
          %s2084 = int_to_ptr.vmem [resolvable:$true] %s2083
          %s2085 = sshll.u32 %s2081, 4
          %s2086 = int_to_ptr.hbm [resolvable:$true] %s2085
          %2088 = dma.vmem_to_hbm [thread:$0]  %s2084, 64, %s2086, %s2049
        $region75: #{_lambda_.1} parent=59 // pred_fallthru
          _
        // Predicated region
        $region76: #{_lambda_.1} parent=59 // pred_check
          %p2089 = pneg %p315
        $region77: #{_lambda_.1} parent=59 // pred_check_branch
          %2091 = sbr.rel (%p2089) target = $region79
        $region78: #{_lambda_.1} parent=59 // pred_region
          %2093 = vsyncadd %s2054, 0
          %s2094 = smul.addr %s30, 8
          %s2095 = smul.addr %s2094, 8
          %s2096 = scalar_lea.hbm %s12, %s2095
          %s2097 = sshll.u32 %s2057, 4
          %s2098 = int_to_ptr.vmem [resolvable:$true] %s2097
          %s2099 = sshll.u32 %s2096, 4
          %s2100 = int_to_ptr.hbm [resolvable:$true] %s2099
          %2105 = dma.vmem_to_hbm [thread:$0]  %s2098, 1024, %s2100, %s2054, 128, 128, 8
        $region79: #{_lambda_.1} parent=59 // pred_fallthru
          _
      $region60: #{_lambda_.1} parent=5 // pred_fallthru
        _
      %p2106 = scmp.le.s32.totalorder 2, %s25
      // Predicated region
      $region80: #{_lambda_.1} parent=5 // pred_check
        %p2107 = pneg %p2106
      $region81: #{_lambda_.1} parent=5 // pred_check_branch
        %2109 = sbr.rel (%p2107) target = $region83
      $region82: #{_lambda_.1} parent=5 // pred_region
        %s2110 = ssub.s32 %s25, 2
        // Predicated region
        $region84: #{_lambda_.1} parent=82 // pred_check
          %p2111 = pneg %p269
        $region85: #{_lambda_.1} parent=82 // pred_check_branch
          %2113 = sbr.rel (%p2111) target = $region87
        $region86: #{_lambda_.1} parent=82 // pred_region
          %s2114 = sand.u32 %s254, 1
          %s2115 = scalar_lea.sflag [#allocation4], %s2114
          %s2116 = sand.u32 %s254, 1
          %s2117 = smul.addr %s2116, 16
          %s2118 = scalar_lea.vmem [#allocation3], %s2117
          %2120 = dma.done %s2115, 256
        $region87: #{_lambda_.1} parent=82 // pred_fallthru
          _
        // Predicated region
        $region88: #{_lambda_.1} parent=82 // pred_check
          %p2121 = pneg %p295
        $region89: #{_lambda_.1} parent=82 // pred_check_branch
          %2123 = sbr.rel (%p2121) target = $region91
        $region90: #{_lambda_.1} parent=82 // pred_region
          %s2124 = sand.u32 %s31, 1
          %s2125 = scalar_lea.sflag [#allocation6], %s2124
          %s2126 = sand.u32 %s280, 1
          %s2127 = smul.addr %s2126, 4
          %s2128 = scalar_lea.vmem [#allocation5], %s2127
          %2130 = dma.done %s2125, 64
        $region91: #{_lambda_.1} parent=82 // pred_fallthru
          _
        // Predicated region
        $region92: #{_lambda_.1} parent=82 // pred_check
          %p2131 = pneg %p321
        $region93: #{_lambda_.1} parent=82 // pred_check_branch
          %2133 = sbr.rel (%p2131) target = $region95
        $region94: #{_lambda_.1} parent=82 // pred_region
          %s2134 = sand.u32 %s31, 1
          %s2135 = scalar_lea.sflag [#allocation6], %s2134
          %s2136 = sand.u32 %s306, 1
          %s2137 = smul.addr %s2136, 64
          %s2138 = scalar_lea.vmem [#allocation7], %s2137
          %2140 = dma.done %s2135, 1024
        $region95: #{_lambda_.1} parent=82 // pred_fallthru
          _
      $region83: #{_lambda_.1} parent=5 // pred_fallthru
        _
    $region6: #{_lambda_.1} parent=1 // loop_footer
      %s29 = sadd.s32 1, %s25
    $region7: #{_lambda_.1} parent=1 // loop_footer_branch
      %24 = sbr.rel target = $region3
    $region8: #{_lambda_.1} parent=1 // loop_exit
      _
    %2141 = vsyncpa [#allocation4], 1
    %s2142 = scalar_lea.sflag [#allocation4], 1
    %2143 = vsyncpa %s2142, 1
    %2144 = vsyncpa [#allocation6], 1
    %s2145 = scalar_lea.sflag [#allocation6], 1
    %2146 = vsyncpa %s2145, 1

</llo_original>
